<compile_context>
chip_gen: v7x
topology: tpu7x:2x2x1
jax: 0.10.0
libtpu: 0.0.40
codegen_flags: <defaults>
</compile_context>

<pallas_src>
import functools

import jax
import jax.numpy as jnp
from jax.experimental import pallas as pl
from jax.experimental.pallas import tpu as pltpu

BN_EPS = 1e-5
LANE = 128
# Set to jnp.bfloat16 on v5e/v6e/v7x for ~2x MXU rate and half the weight bytes
# (weights are pre-cast once in prepare_params; accumulation stays f32).
# f32 keeps exact PyTorch semantics.
MATMUL_DTYPE = jnp.float32

_COMPILER_PARAMS = pltpu.CompilerParams(
    dimension_semantics=("parallel",),          # batch-tile axis -> megacore
    vmem_limit_bytes=48 * 1024 * 1024,          # safe headroom on v7x (64 MiB)
)


def _round_up(x, m):
    return (x + m - 1) // m * m


def _weight_spec(shape):
    zeros = (0,) * len(shape)
    return pl.BlockSpec(shape, lambda i: zeros)


def _pick_batch_tile(n, target):
    """Batch tile and padded batch.  Small batches run as a single tile; large
    batches use a multiple-of-8 tile and the batch is padded up in the wrapper
    (never a single giant tile that blows the VMEM budget)."""
    if n <= target:
        return n, n
    bn = _round_up(min(target, n), 8)
    return bn, _round_up(n, bn)


# ------------------------------------------------------------------
# Parameter preparation: fold BN, fuse head first layers, split second layers,
# lane-pad, and pre-cast matmul operands.
# ------------------------------------------------------------------
def prepare_params(p):
    f32 = jnp.float32
    cf, c_in = p['w_conv'].shape[0], p['w_conv'].shape[1]
    cf_pad = _round_up(cf, LANE)
    # conv weight for the im2col matmul: (Cf, C, 3, 3) -> (9*C, Cf_pad),
    # K ordered (kh, kw, c) to match the wrapper's patch extraction.
    w_conv = jnp.transpose(p['w_conv'], (2, 3, 1, 0)).reshape(9 * c_in, cf)
    w_conv = jnp.zeros((9 * c_in, cf_pad), f32).at[:, :cf].set(w_conv)
    b_conv = jnp.zeros((1, cf_pad), f32).at[:, :cf].set(p['b_conv'])

    # bottleneck Linear with eval-mode BatchNorm folded in; rows padded to cf_pad
    feat_dim, bdim = p['wb'].shape
    scale = p['gamma'] * jax.lax.rsqrt(p['var'] + BN_EPS)            # (1, B)
    wb = p['wb'] * scale
    bb = (p['bb'] - p['mean']) * scale + p['beta']
    wb = jnp.zeros((cf_pad, bdim), f32).at[:feat_dim, :].set(wb)

    # head + adv head: first Linear fused along the lane (output) dim
    w1 = jnp.concatenate([p['wh1'], p['wa1']], axis=1)               # (B, 2*width)
    b1 = jnp.concatenate([p['bh1'], p['ba1']], axis=1)               # (1, 2*width)

    # second Linear: two separate (width, k_pad) matrices (no block-diagonal
    # zero padding -> half the MACs and half the bytes of the previous version)
    n_classes = p['wh2'].shape[1]
    k_pad = _round_up(n_classes, LANE)
    w2h = jnp.zeros((p['wh2'].shape[0], k_pad), f32).at[:, :n_classes].set(p['wh2'])
    w2a = jnp.zeros((p['wa2'].shape[0], k_pad), f32).at[:, :n_classes].set(p['wa2'])
    b2h = jnp.zeros((1, k_pad), f32).at[:, :n_classes].set(p['bh2'])
    b2a = jnp.zeros((1, k_pad), f32).at[:, :n_classes].set(p['ba2'])

    md = MATMUL_DTYPE
    return {'w_conv': w_conv.astype(md), 'b_conv': b_conv,
            'wb': wb.astype(md), 'bb': bb,
            'w1': w1.astype(md), 'b1': b1,
            'w2h': w2h.astype(md), 'b2h': b2h,
            'w2a': w2a.astype(md), 'b2a': b2a}


# ------------------------------------------------------------------
# Fused kernel: backbone (im2col conv + bias + ReLU + avg-pool) -> bottleneck
# (eval-BN folded) -> head / adv-head MLPs, one lane-dense output slab.
# ------------------------------------------------------------------
def tlib_classifier_mdd_forward(x, kp, *, n_classes, batch_tile=32):
    """x: (N, C, H, W) NCHW images. Returns (out, out_adv), each (N, n_classes)."""
    N, C, H, W = x.shape
    HW = H * W
    KC = 9 * C
    cf_pad = kp['b_conv'].shape[1]
    width = kp['w1'].shape[1] // 2
    k_pad = kp['b2h'].shape[1]
    bn, n_pad = _pick_batch_tile(N, batch_tile)
    inv_hw = 1.0 / float(HW)

    # Cheap HBM im2col (pure XLA, ~9*C floats/pixel): lets the kernel do one
    # K=9*C matmul with a lane-packed K dim instead of 9 shifted K=C matmuls.
    xpad = jnp.pad(x, ((0, 0), (0, 0), (1, 1), (1, 1)))              # (N,C,H+2,W+2)
    taps = [xpad[:, :, di:di + H, dj:dj + W] for di in range(3) for dj in range(3)]
    patches = jnp.stack(taps, axis=1)                                # (N,9,C,H,W)
    patches = patches.transpose(0, 3, 4, 1, 2).reshape(N, HW, KC)    # (N,HW,9*C)
    if n_pad != N:
        patches = jnp.pad(patches, ((0, n_pad - N), (0, 0), (0, 0)))

    def kernel(p_ref, wc_ref, bc_ref, wb_ref, bb_ref, w1_ref, b1_ref,
               w2h_ref, b2h_ref, w2a_ref, b2a_ref, o_ref):
        md = MATMUL_DTYPE
        # --- backbone: 3x3 conv as one (bn*HW, 9C) @ (9C, cf_pad) matmul ---
        pm = p_ref[...].reshape(bn * HW, KC).astype(md)
        y = jnp.dot(pm, wc_ref[...], preferred_element_type=jnp.float32)
        y = jnp.maximum(y + bc_ref[...], 0.0)                         # bias + ReLU
        # global average pool as a scaled sublane-axis sum
        feat = y.reshape(bn, HW, cf_pad).sum(axis=1) * inv_hw         # (bn, cf_pad)
        # --- bottleneck: Linear with eval-BatchNorm folded in, then ReLU ---
        z = jnp.maximum(
            jnp.dot(feat.astype(md), wb_ref[...],
                    preferred_element_type=jnp.float32) + bb_ref[...], 0.0)
        # --- head + adv-head first Linear fused (GRL / Dropout identity) ---
        h = jnp.maximum(
            jnp.dot(z.astype(md), w1_ref[...],
                    preferred_element_type=jnp.float32) + b1_ref[...], 0.0)
        # --- second Linear: two half matmuls into lane-aligned output halves ---
        o_ref[:, :k_pad] = jnp.dot(h[:, :width].astype(md), w2h_ref[...],
                                   preferred_element_type=jnp.float32) + b2h_ref[...]
        o_ref[:, k_pad:] = jnp.dot(h[:, width:].astype(md), w2a_ref[...],
                                   preferred_element_type=jnp.float32) + b2a_ref[...]

    slab = pl.pallas_call(
        kernel,
        grid=(n_pad // bn,),
        in_specs=[pl.BlockSpec((bn, HW, KC), lambda i: (i, 0, 0)),
                  _weight_spec(kp['w_conv'].shape), _weight_spec(kp['b_conv'].shape),
                  _weight_spec(kp['wb'].shape), _weight_spec(kp['bb'].shape),
                  _weight_spec(kp['w1'].shape), _weight_spec(kp['b1'].shape),
                  _weight_spec(kp['w2h'].shape), _weight_spec(kp['b2h'].shape),
                  _weight_spec(kp['w2a'].shape), _weight_spec(kp['b2a'].shape)],
        out_specs=pl.BlockSpec((bn, 2 * k_pad), lambda i: (i, 0)),
        out_shape=jax.ShapeDtypeStruct((n_pad, 2 * k_pad), jnp.float32),
        compiler_params=_COMPILER_PARAMS,
    )(patches, kp['w_conv'], kp['b_conv'], kp['wb'], kp['bb'],
      kp['w1'], kp['b1'], kp['w2h'], kp['b2h'], kp['w2a'], kp['b2a'])

    # slice the lane-dense slab back to the two (N, n_classes) outputs (free glue)
    return slab[:N, :n_classes], slab[:N, k_pad:k_pad + n_classes]


# ------------------------------------------------------------------
# Synthetic parameters (stand-in backbone + MDD heads)
# ------------------------------------------------------------------
def init_params(key, c_in=3, feat_dim=64, bottleneck_dim=128, width=1024, n_classes=10):
    ks = jax.random.split(key, 12)
    s = 0.05
    return {
        # synthetic backbone conv 3x3
        'w_conv': s * jax.random.normal(ks[0], (feat_dim, c_in, 3, 3), jnp.float32),
        'b_conv': s * jax.random.normal(ks[1], (feat_dim,), jnp.float32),
        # bottleneck Linear(feat_dim -> bottleneck_dim) + BatchNorm1d (eval stats)
        'wb': s * jax.random.normal(ks[2], (feat_dim, bottleneck_dim), jnp.float32),
        'bb': s * jax.random.normal(ks[3], (1, bottleneck_dim), jnp.float32),
        'gamma': jnp.ones((1, bottleneck_dim), jnp.float32),
        'beta': jnp.zeros((1, bottleneck_dim), jnp.float32),
        'mean': jnp.zeros((1, bottleneck_dim), jnp.float32),
        'var': jnp.ones((1, bottleneck_dim), jnp.float32),
        # head: Linear(bottleneck_dim -> width) -> ReLU -> Linear(width -> n_classes)
        'wh1': s * jax.random.normal(ks[4], (bottleneck_dim, width), jnp.float32),
        'bh1': s * jax.random.normal(ks[5], (1, width), jnp.float32),
        'wh2': s * jax.random.normal(ks[6], (width, n_classes), jnp.float32),
        'bh2': s * jax.random.normal(ks[7], (1, n_classes), jnp.float32),
        # adversarial head: same structure
        'wa1': s * jax.random.normal(ks[8], (bottleneck_dim, width), jnp.float32),
        'ba1': s * jax.random.normal(ks[9], (1, width), jnp.float32),
        'wa2': s * jax.random.normal(ks[10], (width, n_classes), jnp.float32),
        'ba2': s * jax.random.normal(ks[11], (1, n_classes), jnp.float32),
    }


if __name__ == "__main__":
    key = jax.random.PRNGKey(0)
    k_x, k_p = jax.random.split(key)
    # small shapes: batch=2, channels=3, spatial=16x16, n_classes=10
    x = jax.random.normal(k_x, (2, 3, 16, 16), jnp.float32)
    params = init_params(k_p)
    kparams = prepare_params(params)          # BN fold / head fusion / lane padding

    fwd = jax.jit(functools.partial(tlib_classifier_mdd_forward, n_classes=10))
    out, out_adv = fwd(x, kparams)
    jax.block_until_ready((out, out_adv))

    assert out.shape == (2, 10) and out_adv.shape == (2, 10)
    assert jnp.all(jnp.isfinite(out)) and jnp.all(jnp.isfinite(out_adv))
    print("KERNEL_OK")
</pallas_src>

<mosaic_0001>
module attributes {stable_mosaic.version = 11 : i64} {
  func.func @kernel(%arg0: i32, %arg1: memref<2x256x27xf32, #tpu.memory_space<vmem>>, %arg2: memref<27x128xf32, #tpu.memory_space<vmem>>, %arg3: memref<1x128xf32, #tpu.memory_space<vmem>>, %arg4: memref<128x128xf32, #tpu.memory_space<vmem>>, %arg5: memref<1x128xf32, #tpu.memory_space<vmem>>, %arg6: memref<128x2048xf32, #tpu.memory_space<vmem>>, %arg7: memref<1x2048xf32, #tpu.memory_space<vmem>>, %arg8: memref<1024x128xf32, #tpu.memory_space<vmem>>, %arg9: memref<1x128xf32, #tpu.memory_space<vmem>>, %arg10: memref<1024x128xf32, #tpu.memory_space<vmem>>, %arg11: memref<1x128xf32, #tpu.memory_space<vmem>>, %arg12: memref<2x256xf32, #tpu.memory_space<vmem>>) attributes {dimension_semantics = [#tpu.dimension_semantics<parallel>], iteration_bounds = array<i64: 1>, scalar_prefetch = 0 : i64, scratch_operands = 0 : i64, tpu.core_type = #tpu.core_type<tc>, window_params = [{transform_indices = @transform_0, window_bounds = array<i64: 2, 256, 27>}, {pipeline_mode = #tpu.pipeline_mode<synchronous>, transform_indices = @transform_1, window_bounds = array<i64: 27, 128>}, {pipeline_mode = #tpu.pipeline_mode<synchronous>, transform_indices = @transform_2, window_bounds = array<i64: 1, 128>}, {pipeline_mode = #tpu.pipeline_mode<synchronous>, transform_indices = @transform_3, window_bounds = array<i64: 128, 128>}, {pipeline_mode = #tpu.pipeline_mode<synchronous>, transform_indices = @transform_4, window_bounds = array<i64: 1, 128>}, {pipeline_mode = #tpu.pipeline_mode<synchronous>, transform_indices = @transform_5, window_bounds = array<i64: 128, 2048>}, {pipeline_mode = #tpu.pipeline_mode<synchronous>, transform_indices = @transform_6, window_bounds = array<i64: 1, 2048>}, {pipeline_mode = #tpu.pipeline_mode<synchronous>, transform_indices = @transform_7, window_bounds = array<i64: 1024, 128>}, {pipeline_mode = #tpu.pipeline_mode<synchronous>, transform_indices = @transform_8, window_bounds = array<i64: 1, 128>}, {pipeline_mode = #tpu.pipeline_mode<synchronous>, transform_indices = @transform_9, window_bounds = array<i64: 1024, 128>}, {pipeline_mode = #tpu.pipeline_mode<synchronous>, transform_indices = @transform_10, window_bounds = array<i64: 1, 128>}, {transform_indices = @transform_11, window_bounds = array<i64: 2, 256>}]} {
    %c0 = arith.constant 0 : index
    %c0_0 = arith.constant 0 : index
    %c0_1 = arith.constant 0 : index
    %0 = vector.load %arg1[%c0, %c0_0, %c0_1] : memref<2x256x27xf32, #tpu.memory_space<vmem>>, vector<2x256x27xf32>
    %1 = vector.shape_cast %0 : vector<2x256x27xf32> to vector<512x27xf32>
    %c0_2 = arith.constant 0 : index
    %c0_3 = arith.constant 0 : index
    %2 = vector.load %arg2[%c0_2, %c0_3] : memref<27x128xf32, #tpu.memory_space<vmem>>, vector<27x128xf32>
    %cst = arith.constant dense<0.000000e+00> : vector<512x128xf32>
    %3 = tpu.matmul %1, %2, %cst {dimension_numbers = #tpu.dot_dimension_numbers<[1], [0], [0], [1], [0, 0, 1, 1], [], []>} : vector<512x27xf32>, vector<27x128xf32>, vector<512x128xf32> -> vector<512x128xf32>
    %c0_4 = arith.constant 0 : index
    %c0_5 = arith.constant 0 : index
    %4 = vector.load %arg3[%c0_4, %c0_5] : memref<1x128xf32, #tpu.memory_space<vmem>>, vector<1x128xf32>
    %5 = vector.broadcast %4 : vector<1x128xf32> to vector<512x128xf32>
    %6 = arith.addf %3, %5 : vector<512x128xf32>
    %cst_6 = arith.constant 0.000000e+00 : f32
    %7 = vector.broadcast %cst_6 : f32 to vector<512x128xf32>
    %8 = arith.maximumf %6, %7 : vector<512x128xf32>
    %9 = vector.shape_cast %8 : vector<512x128xf32> to vector<2x256x128xf32>
    %cst_7 = arith.constant dense<0.000000e+00> : vector<2x128xf32>
    %10 = vector.multi_reduction <add>, %9, %cst_7 [1] : vector<2x256x128xf32> to vector<2x128xf32>
    %cst_8 = arith.constant 3.906250e-03 : f32
    %11 = vector.broadcast %cst_8 : f32 to vector<2x128xf32>
    %12 = arith.mulf %10, %11 : vector<2x128xf32>
    %c0_9 = arith.constant 0 : index
    %c0_10 = arith.constant 0 : index
    %13 = vector.load %arg4[%c0_9, %c0_10] : memref<128x128xf32, #tpu.memory_space<vmem>>, vector<128x128xf32>
    %cst_11 = arith.constant dense<0.000000e+00> : vector<2x128xf32>
    %14 = tpu.matmul %12, %13, %cst_11 {dimension_numbers = #tpu.dot_dimension_numbers<[1], [0], [0], [1], [0, 0, 1, 1], [], []>} : vector<2x128xf32>, vector<128x128xf32>, vector<2x128xf32> -> vector<2x128xf32>
    %c0_12 = arith.constant 0 : index
    %c0_13 = arith.constant 0 : index
    %15 = vector.load %arg5[%c0_12, %c0_13] : memref<1x128xf32, #tpu.memory_space<vmem>>, vector<1x128xf32>
    %16 = vector.broadcast %15 : vector<1x128xf32> to vector<2x128xf32>
    %17 = arith.addf %14, %16 : vector<2x128xf32>
    %cst_14 = arith.constant 0.000000e+00 : f32
    %18 = vector.broadcast %cst_14 : f32 to vector<2x128xf32>
    %19 = arith.maximumf %17, %18 : vector<2x128xf32>
    %c0_15 = arith.constant 0 : index
    %c0_16 = arith.constant 0 : index
    %20 = vector.load %arg6[%c0_15, %c0_16] : memref<128x2048xf32, #tpu.memory_space<vmem>>, vector<128x2048xf32>
    %cst_17 = arith.constant dense<0.000000e+00> : vector<2x2048xf32>
    %21 = tpu.matmul %19, %20, %cst_17 {dimension_numbers = #tpu.dot_dimension_numbers<[1], [0], [0], [1], [0, 0, 1, 1], [], []>} : vector<2x128xf32>, vector<128x2048xf32>, vector<2x2048xf32> -> vector<2x2048xf32>
    %c0_18 = arith.constant 0 : index
    %c0_19 = arith.constant 0 : index
    %22 = vector.load %arg7[%c0_18, %c0_19] : memref<1x2048xf32, #tpu.memory_space<vmem>>, vector<1x2048xf32>
    %23 = vector.broadcast %22 : vector<1x2048xf32> to vector<2x2048xf32>
    %24 = arith.addf %21, %23 : vector<2x2048xf32>
    %cst_20 = arith.constant 0.000000e+00 : f32
    %25 = vector.broadcast %cst_20 : f32 to vector<2x2048xf32>
    %26 = arith.maximumf %24, %25 : vector<2x2048xf32>
    %27 = vector.extract_strided_slice %26 {offsets = [0, 0], sizes = [2, 1024], strides = [1, 1]} : vector<2x2048xf32> to vector<2x1024xf32>
    %c0_21 = arith.constant 0 : index
    %c0_22 = arith.constant 0 : index
    %28 = vector.load %arg8[%c0_21, %c0_22] : memref<1024x128xf32, #tpu.memory_space<vmem>>, vector<1024x128xf32>
    %cst_23 = arith.constant dense<0.000000e+00> : vector<2x128xf32>
    %29 = tpu.matmul %27, %28, %cst_23 {dimension_numbers = #tpu.dot_dimension_numbers<[1], [0], [0], [1], [0, 0, 1, 1], [], []>} : vector<2x1024xf32>, vector<1024x128xf32>, vector<2x128xf32> -> vector<2x128xf32>
    %c0_24 = arith.constant 0 : index
    %c0_25 = arith.constant 0 : index
    %30 = vector.load %arg9[%c0_24, %c0_25] : memref<1x128xf32, #tpu.memory_space<vmem>>, vector<1x128xf32>
    %31 = vector.broadcast %30 : vector<1x128xf32> to vector<2x128xf32>
    %32 = arith.addf %29, %31 : vector<2x128xf32>
    %c0_26 = arith.constant 0 : index
    %c0_27 = arith.constant 0 : index
    %33 = vector.load %arg12[%c0_26, %c0_27] : memref<2x256xf32, #tpu.memory_space<vmem>>, vector<2x128xf32>
    tpu.vector_store %arg12[%c0_26, %c0_27], %32 {strides = array<i32>} : memref<2x256xf32, #tpu.memory_space<vmem>>, vector<2x128xf32>,
    %34 = vector.extract_strided_slice %26 {offsets = [0, 1024], sizes = [2, 1024], strides = [1, 1]} : vector<2x2048xf32> to vector<2x1024xf32>
    %c0_28 = arith.constant 0 : index
    %c0_29 = arith.constant 0 : index
    %35 = vector.load %arg10[%c0_28, %c0_29] : memref<1024x128xf32, #tpu.memory_space<vmem>>, vector<1024x128xf32>
    %cst_30 = arith.constant dense<0.000000e+00> : vector<2x128xf32>
    %36 = tpu.matmul %34, %35, %cst_30 {dimension_numbers = #tpu.dot_dimension_numbers<[1], [0], [0], [1], [0, 0, 1, 1], [], []>} : vector<2x1024xf32>, vector<1024x128xf32>, vector<2x128xf32> -> vector<2x128xf32>
    %c0_31 = arith.constant 0 : index
    %c0_32 = arith.constant 0 : index
    %37 = vector.load %arg11[%c0_31, %c0_32] : memref<1x128xf32, #tpu.memory_space<vmem>>, vector<1x128xf32>
    %38 = vector.broadcast %37 : vector<1x128xf32> to vector<2x128xf32>
    %39 = arith.addf %36, %38 : vector<2x128xf32>
    %c0_33 = arith.constant 0 : index
    %c128 = arith.constant 128 : index
    %40 = vector.load %arg12[%c0_33, %c128] : memref<2x256xf32, #tpu.memory_space<vmem>>, vector<2x128xf32>
    tpu.vector_store %arg12[%c0_33, %c128], %39 {strides = array<i32>} : memref<2x256xf32, #tpu.memory_space<vmem>>, vector<2x128xf32>,
    return
  }
  func.func @transform_0(%arg0: i32) -> (i32, i32, i32) {
    %c0_i32 = arith.constant 0 : i32
    %c0_i32_0 = arith.constant 0 : i32
    %c0_i32_1 = arith.constant 0 : i32
    return %arg0, %c0_i32, %c0_i32_0 : i32, i32, i32
  }
  func.func @transform_1(%arg0: i32) -> (i32, i32) {
    %c0_i32 = arith.constant 0 : i32
    %c0_i32_0 = arith.constant 0 : i32
    %c0_i32_1 = arith.constant 0 : i32
    return %c0_i32, %c0_i32_0 : i32, i32
  }
  func.func @transform_2(%arg0: i32) -> (i32, i32) {
    %c0_i32 = arith.constant 0 : i32
    %c0_i32_0 = arith.constant 0 : i32
    %c0_i32_1 = arith.constant 0 : i32
    return %c0_i32, %c0_i32_0 : i32, i32
  }
  func.func @transform_3(%arg0: i32) -> (i32, i32) {
    %c0_i32 = arith.constant 0 : i32
    %c0_i32_0 = arith.constant 0 : i32
    %c0_i32_1 = arith.constant 0 : i32
    return %c0_i32, %c0_i32_0 : i32, i32
  }
  func.func @transform_4(%arg0: i32) -> (i32, i32) {
    %c0_i32 = arith.constant 0 : i32
    %c0_i32_0 = arith.constant 0 : i32
    %c0_i32_1 = arith.constant 0 : i32
    return %c0_i32, %c0_i32_0 : i32, i32
  }
  func.func @transform_5(%arg0: i32) -> (i32, i32) {
    %c0_i32 = arith.constant 0 : i32
    %c0_i32_0 = arith.constant 0 : i32
    %c0_i32_1 = arith.constant 0 : i32
    return %c0_i32, %c0_i32_0 : i32, i32
  }
  func.func @transform_6(%arg0: i32) -> (i32, i32) {
    %c0_i32 = arith.constant 0 : i32
    %c0_i32_0 = arith.constant 0 : i32
    %c0_i32_1 = arith.constant 0 : i32
    return %c0_i32, %c0_i32_0 : i32, i32
  }
  func.func @transform_7(%arg0: i32) -> (i32, i32) {
    %c0_i32 = arith.constant 0 : i32
    %c0_i32_0 = arith.constant 0 : i32
    %c0_i32_1 = arith.constant 0 : i32
    return %c0_i32, %c0_i32_0 : i32, i32
  }
  func.func @transform_8(%arg0: i32) -> (i32, i32) {
    %c0_i32 = arith.constant 0 : i32
    %c0_i32_0 = arith.constant 0 : i32
    %c0_i32_1 = arith.constant 0 : i32
    return %c0_i32, %c0_i32_0 : i32, i32
  }
  func.func @transform_9(%arg0: i32) -> (i32, i32) {
    %c0_i32 = arith.constant 0 : i32
    %c0_i32_0 = arith.constant 0 : i32
    %c0_i32_1 = arith.constant 0 : i32
    return %c0_i32, %c0_i32_0 : i32, i32
  }
  func.func @transform_10(%arg0: i32) -> (i32, i32) {
    %c0_i32 = arith.constant 0 : i32
    %c0_i32_0 = arith.constant 0 : i32
    %c0_i32_1 = arith.constant 0 : i32
    return %c0_i32, %c0_i32_0 : i32, i32
  }
  func.func @transform_11(%arg0: i32) -> (i32, i32) {
    %c0_i32 = arith.constant 0 : i32
    %c0_i32_0 = arith.constant 0 : i32
    return %arg0, %c0_i32 : i32, i32
  }
}

</mosaic_0001>

<llo_original>
// kernel: tlib_classifier_mdd_forward.1
$region0: #{tlib_classifier_mdd_forward.1}
  #allocation0 [shape = 'u32[]', space=smem, size = 0x4, offset = 0x4, fixed_abs, tag = 'smem constant byte address 0x4 - core index']
  #allocation1 [shape = 'u32[144,128]{1,0:T(1,128)}', space=vmem, size = 0x12000, scoped, tag = 'internal scratch']
  %s0 = inlined_call_operand.vmem [shape: f32[2,256,27], index: 0, kind: input, shape index: {}]
  %s1 = inlined_call_operand.vmem [shape: f32[27,128], index: 1, kind: input, shape index: {}]
  %s2 = inlined_call_operand.vmem [shape: f32[1,128], index: 2, kind: input, shape index: {}]
  %s3 = inlined_call_operand.vmem [shape: f32[128,128], index: 3, kind: input, shape index: {}]
  %s4 = inlined_call_operand.vmem [shape: f32[1,128], index: 4, kind: input, shape index: {}]
  %s5 = inlined_call_operand.vmem [shape: f32[128,2048], index: 5, kind: input, shape index: {}]
  %s6 = inlined_call_operand.vmem [shape: f32[1,2048], index: 6, kind: input, shape index: {}]
  %s7 = inlined_call_operand.vmem [shape: f32[1024,128], index: 7, kind: input, shape index: {}]
  %s8 = inlined_call_operand.vmem [shape: f32[1,128], index: 8, kind: input, shape index: {}]
  %s9 = inlined_call_operand.vmem [shape: f32[1024,128], index: 9, kind: input, shape index: {}]
  %s10 = inlined_call_operand.vmem [shape: f32[1,128], index: 10, kind: input, shape index: {}]
  %s11 = inlined_call_operand.vmem [shape: f32[2,256], index: 11, kind: output, shape index: {}]
  %s12 = sld [smem:[#allocation0]]
  $region54: #{tlib_classifier_mdd_forward.1} parent=0
    _
  %s14 = ssub.s32 1, %s12
  %s15 = scalar_select 0, %s14, %s12
  // Predicated region
  $region2: #{tlib_classifier_mdd_forward.1} parent=0 // pred_check
    _
  $region3: #{tlib_classifier_mdd_forward.1} parent=0 // pred_check_branch
    %17 = sbr.rel (0) target = $region5
  $region4: #{tlib_classifier_mdd_forward.1} parent=0 // pred_region
    _
  $region5: #{tlib_classifier_mdd_forward.1} parent=0 // pred_fallthru
    _
  // Predicated region
  $region6: #{tlib_classifier_mdd_forward.1} parent=0 // pred_check
    _
  $region7: #{tlib_classifier_mdd_forward.1} parent=0 // pred_check_branch
    %19 = sbr.rel (0) target = $region9
  $region8: #{tlib_classifier_mdd_forward.1} parent=0 // pred_region
    _
  $region9: #{tlib_classifier_mdd_forward.1} parent=0 // pred_fallthru
    _
  // Predicated region
  $region10: #{tlib_classifier_mdd_forward.1} parent=0 // pred_check
    _
  $region11: #{tlib_classifier_mdd_forward.1} parent=0 // pred_check_branch
    %21 = sbr.rel (0) target = $region13
  $region12: #{tlib_classifier_mdd_forward.1} parent=0 // pred_region
    _
  $region13: #{tlib_classifier_mdd_forward.1} parent=0 // pred_fallthru
    _
  // Predicated region
  $region14: #{tlib_classifier_mdd_forward.1} parent=0 // pred_check
    _
  $region15: #{tlib_classifier_mdd_forward.1} parent=0 // pred_check_branch
    %23 = sbr.rel (0) target = $region17
  $region16: #{tlib_classifier_mdd_forward.1} parent=0 // pred_region
    _
  $region17: #{tlib_classifier_mdd_forward.1} parent=0 // pred_fallthru
    _
  // Predicated region
  $region18: #{tlib_classifier_mdd_forward.1} parent=0 // pred_check
    _
  $region19: #{tlib_classifier_mdd_forward.1} parent=0 // pred_check_branch
    %25 = sbr.rel (0) target = $region21
  $region20: #{tlib_classifier_mdd_forward.1} parent=0 // pred_region
    _
  $region21: #{tlib_classifier_mdd_forward.1} parent=0 // pred_fallthru
    _
  // Predicated region
  $region22: #{tlib_classifier_mdd_forward.1} parent=0 // pred_check
    _
  $region23: #{tlib_classifier_mdd_forward.1} parent=0 // pred_check_branch
    %27 = sbr.rel (0) target = $region25
  $region24: #{tlib_classifier_mdd_forward.1} parent=0 // pred_region
    _
  $region25: #{tlib_classifier_mdd_forward.1} parent=0 // pred_fallthru
    _
  // Predicated region
  $region26: #{tlib_classifier_mdd_forward.1} parent=0 // pred_check
    _
  $region27: #{tlib_classifier_mdd_forward.1} parent=0 // pred_check_branch
    %29 = sbr.rel (0) target = $region29
  $region28: #{tlib_classifier_mdd_forward.1} parent=0 // pred_region
    _
  $region29: #{tlib_classifier_mdd_forward.1} parent=0 // pred_fallthru
    _
  // Predicated region
  $region30: #{tlib_classifier_mdd_forward.1} parent=0 // pred_check
    _
  $region31: #{tlib_classifier_mdd_forward.1} parent=0 // pred_check_branch
    %31 = sbr.rel (0) target = $region33
  $region32: #{tlib_classifier_mdd_forward.1} parent=0 // pred_region
    _
  $region33: #{tlib_classifier_mdd_forward.1} parent=0 // pred_fallthru
    _
  // Predicated region
  $region34: #{tlib_classifier_mdd_forward.1} parent=0 // pred_check
    _
  $region35: #{tlib_classifier_mdd_forward.1} parent=0 // pred_check_branch
    %33 = sbr.rel (0) target = $region37
  $region36: #{tlib_classifier_mdd_forward.1} parent=0 // pred_region
    _
  $region37: #{tlib_classifier_mdd_forward.1} parent=0 // pred_fallthru
    _
  // Predicated region
  $region38: #{tlib_classifier_mdd_forward.1} parent=0 // pred_check
    _
  $region39: #{tlib_classifier_mdd_forward.1} parent=0 // pred_check_branch
    %35 = sbr.rel (0) target = $region41
  $region40: #{tlib_classifier_mdd_forward.1} parent=0 // pred_region
    _
  $region41: #{tlib_classifier_mdd_forward.1} parent=0 // pred_fallthru
    _
  // Predicated region
  $region42: #{tlib_classifier_mdd_forward.1} parent=0 // pred_check
    _
  $region43: #{tlib_classifier_mdd_forward.1} parent=0 // pred_check_branch
    %37 = sbr.rel (0) target = $region45
  $region44: #{tlib_classifier_mdd_forward.1} parent=0 // pred_region
    _
  $region45: #{tlib_classifier_mdd_forward.1} parent=0 // pred_fallthru
    _
  %v38 = vld [vmem:[%s0] sm:$0xff]
  %v39 = vld [vmem:[%s0 + $0x8] sm:$0xff]
  %v40 = vld [vmem:[%s0 + $0x10] sm:$0xff]
  %v41 = vld [vmem:[%s0 + $0x18] sm:$0xff]
  %v42 = vld [vmem:[%s0 + $0x20] sm:$0xff]
  %v43 = vld [vmem:[%s0 + $0x28] sm:$0xff]
  %v44 = vld [vmem:[%s0 + $0x30] sm:$0xff]
  %v45 = vld [vmem:[%s0 + $0x38] sm:$0xff]
  %v46 = vld [vmem:[%s0 + $0x40] sm:$0xff]
  %v47 = vld [vmem:[%s0 + $0x48] sm:$0xff]
  %v48 = vld [vmem:[%s0 + $0x50] sm:$0xff]
  %v49 = vld [vmem:[%s0 + $0x58] sm:$0xff]
  %v50 = vld [vmem:[%s0 + $0x60] sm:$0xff]
  %v51 = vld [vmem:[%s0 + $0x68] sm:$0xff]
  %v52 = vld [vmem:[%s0 + $0x70] sm:$0xff]
  %v53 = vld [vmem:[%s0 + $0x78] sm:$0xff]
  %v54 = vld [vmem:[%s0 + $0x80] sm:$0xff]
  %v55 = vld [vmem:[%s0 + $0x88] sm:$0xff]
  %v56 = vld [vmem:[%s0 + $0x90] sm:$0xff]
  %v57 = vld [vmem:[%s0 + $0x98] sm:$0xff]
  %v58 = vld [vmem:[%s0 + $0xa0] sm:$0xff]
  %v59 = vld [vmem:[%s0 + $0xa8] sm:$0xff]
  %v60 = vld [vmem:[%s0 + $0xb0] sm:$0xff]
  %v61 = vld [vmem:[%s0 + $0xb8] sm:$0xff]
  %v62 = vld [vmem:[%s0 + $0xc0] sm:$0xff]
  %v63 = vld [vmem:[%s0 + $0xc8] sm:$0xff]
  %v64 = vld [vmem:[%s0 + $0xd0] sm:$0xff]
  %v65 = vld [vmem:[%s0 + $0xd8] sm:$0xff]
  %v66 = vld [vmem:[%s0 + $0xe0] sm:$0xff]
  %v67 = vld [vmem:[%s0 + $0xe8] sm:$0xff]
  %v68 = vld [vmem:[%s0 + $0xf0] sm:$0xff]
  %v69 = vld [vmem:[%s0 + $0xf8] sm:$0xff]
  %v70 = vld [vmem:[%s0 + $0x100] sm:$0xff]
  %v71 = vld [vmem:[%s0 + $0x108] sm:$0xff]
  %v72 = vld [vmem:[%s0 + $0x110] sm:$0xff]
  %v73 = vld [vmem:[%s0 + $0x118] sm:$0xff]
  %v74 = vld [vmem:[%s0 + $0x120] sm:$0xff]
  %v75 = vld [vmem:[%s0 + $0x128] sm:$0xff]
  %v76 = vld [vmem:[%s0 + $0x130] sm:$0xff]
  %v77 = vld [vmem:[%s0 + $0x138] sm:$0xff]
  %v78 = vld [vmem:[%s0 + $0x140] sm:$0xff]
  %v79 = vld [vmem:[%s0 + $0x148] sm:$0xff]
  %v80 = vld [vmem:[%s0 + $0x150] sm:$0xff]
  %v81 = vld [vmem:[%s0 + $0x158] sm:$0xff]
  %v82 = vld [vmem:[%s0 + $0x160] sm:$0xff]
  %v83 = vld [vmem:[%s0 + $0x168] sm:$0xff]
  %v84 = vld [vmem:[%s0 + $0x170] sm:$0xff]
  %v85 = vld [vmem:[%s0 + $0x178] sm:$0xff]
  %v86 = vld [vmem:[%s0 + $0x180] sm:$0xff]
  %v87 = vld [vmem:[%s0 + $0x188] sm:$0xff]
  %v88 = vld [vmem:[%s0 + $0x190] sm:$0xff]
  %v89 = vld [vmem:[%s0 + $0x198] sm:$0xff]
  %v90 = vld [vmem:[%s0 + $0x1a0] sm:$0xff]
  %v91 = vld [vmem:[%s0 + $0x1a8] sm:$0xff]
  %v92 = vld [vmem:[%s0 + $0x1b0] sm:$0xff]
  %v93 = vld [vmem:[%s0 + $0x1b8] sm:$0xff]
  %v94 = vld [vmem:[%s0 + $0x1c0] sm:$0xff]
  %v95 = vld [vmem:[%s0 + $0x1c8] sm:$0xff]
  %v96 = vld [vmem:[%s0 + $0x1d0] sm:$0xff]
  %v97 = vld [vmem:[%s0 + $0x1d8] sm:$0xff]
  %v98 = vld [vmem:[%s0 + $0x1e0] sm:$0xff]
  %v99 = vld [vmem:[%s0 + $0x1e8] sm:$0xff]
  %v100 = vld [vmem:[%s0 + $0x1f0] sm:$0xff]
  %v101 = vld [vmem:[%s0 + $0x1f8] sm:$0xff]
  %v102 = vld [vmem:[%s1] sm:$0xff]
  %v103 = vld [vmem:[%s1 + $0x8] sm:$0xff]
  %v104 = vld [vmem:[%s1 + $0x10] sm:$0xff]
  %v105 = vld [vmem:[%s1 + $0x18] sm:$0x7]
  %v106 = vld [vmem:[%s2] sm:$0x1]
  %v108 = vlaneseq
  %v109 = vshrl.u32 %v108, 7
  %v110 = vsub.s32 0, %v109
  %v111 = vrot.slane %v106, %v110
  %vm113 = vcmask 220160
  %v115 = vsel %vm113, %v38, 0
  %v118 = vsel %vm113, %v39, 0
  %v121 = vsel %vm113, %v40, 0
  %v124 = vsel %vm113, %v41, 0
  %v127 = vsel %vm113, %v42, 0
  %v130 = vsel %vm113, %v43, 0
  %v133 = vsel %vm113, %v44, 0
  %v136 = vsel %vm113, %v45, 0
  %v139 = vsel %vm113, %v46, 0
  %v142 = vsel %vm113, %v47, 0
  %v145 = vsel %vm113, %v48, 0
  %v148 = vsel %vm113, %v49, 0
  %v151 = vsel %vm113, %v50, 0
  %v154 = vsel %vm113, %v51, 0
  %v157 = vsel %vm113, %v52, 0
  %v160 = vsel %vm113, %v53, 0
  %v163 = vsel %vm113, %v54, 0
  %v166 = vsel %vm113, %v55, 0
  %v169 = vsel %vm113, %v56, 0
  %v172 = vsel %vm113, %v57, 0
  %v175 = vsel %vm113, %v58, 0
  %v178 = vsel %vm113, %v59, 0
  %v181 = vsel %vm113, %v60, 0
  %v184 = vsel %vm113, %v61, 0
  %v187 = vsel %vm113, %v62, 0
  %v190 = vsel %vm113, %v63, 0
  %v193 = vsel %vm113, %v64, 0
  %v196 = vsel %vm113, %v65, 0
  %v199 = vsel %vm113, %v66, 0
  %v202 = vsel %vm113, %v67, 0
  %v205 = vsel %vm113, %v68, 0
  %v208 = vsel %vm113, %v69, 0
  %v211 = vsel %vm113, %v70, 0
  %v214 = vsel %vm113, %v71, 0
  %v217 = vsel %vm113, %v72, 0
  %v220 = vsel %vm113, %v73, 0
  %v223 = vsel %vm113, %v74, 0
  %v226 = vsel %vm113, %v75, 0
  %v229 = vsel %vm113, %v76, 0
  %v232 = vsel %vm113, %v77, 0
  %v235 = vsel %vm113, %v78, 0
  %v238 = vsel %vm113, %v79, 0
  %v241 = vsel %vm113, %v80, 0
  %v244 = vsel %vm113, %v81, 0
  %v247 = vsel %vm113, %v82, 0
  %v250 = vsel %vm113, %v83, 0
  %v253 = vsel %vm113, %v84, 0
  %v256 = vsel %vm113, %v85, 0
  %v259 = vsel %vm113, %v86, 0
  %v262 = vsel %vm113, %v87, 0
  %v265 = vsel %vm113, %v88, 0
  %v268 = vsel %vm113, %v89, 0
  %v271 = vsel %vm113, %v90, 0
  %v274 = vsel %vm113, %v91, 0
  %v277 = vsel %vm113, %v92, 0
  %v280 = vsel %vm113, %v93, 0
  %v283 = vsel %vm113, %v94, 0
  %v286 = vsel %vm113, %v95, 0
  %v289 = vsel %vm113, %v96, 0
  %v292 = vsel %vm113, %v97, 0
  %v295 = vsel %vm113, %v98, 0
  %v298 = vsel %vm113, %v99, 0
  %v301 = vsel %vm113, %v100, 0
  %v304 = vsel %vm113, %v101, 0
  %vm306 = vcmask 1042432
  %v308 = vsel %vm306, %v105, 0
  %310 = vmatprep.subr.mxu0 0.0
  %311 = vmatpush1.msra.mxu0 %v102
  %312 = vmatprep.subr.mxu0 0.0
  %313 = vmatpush1.msra.mxu0 %v103
  %314 = vmatprep.subr.mxu0 0.0
  %315 = vmatpush1.msra.mxu0 %v104
  %316 = vmatprep.subr.mxu0 0.0
  %317 = vmatpush1.msra.mxu0 %v308
  %318 = vmatprep.subr.mxu0 0.0
  %319 = vmatpush1.msra.mxu0 0.0
  %320 = vmatprep.subr.mxu0 0.0
  %321 = vmatpush1.msra.mxu0 0.0
  %322 = vmatprep.subr.mxu0 0.0
  %323 = vmatpush1.msra.mxu0 0.0
  %324 = vmatprep.subr.mxu0 0.0
  %325 = vmatpush1.msra.mxu0 0.0
  %326 = vmatprep.subr.mxu0 0.0
  %327 = vmatpush1.msra.mxu0 0.0
  %328 = vmatprep.subr.mxu0 0.0
  %329 = vmatpush1.msra.mxu0 0.0
  %330 = vmatprep.subr.mxu0 0.0
  %331 = vmatpush1.msra.mxu0 0.0
  %332 = vmatprep.subr.mxu0 0.0
  %333 = vmatpush1.msra.mxu0 0.0
  %334 = vmatprep.subr.mxu0 0.0
  %335 = vmatpush1.msra.mxu0 0.0
  %336 = vmatprep.subr.mxu0 0.0
  %337 = vmatpush1.msra.mxu0 0.0
  %338 = vmatprep.subr.mxu0 0.0
  %339 = vmatpush1.msra.mxu0 0.0
  %340 = vmatprep.subr.mxu0 0.0
  %341 = vmatpush1.msra.mxu0 0.0
  %342 = vmatprep.subr.mxu0 0.0
  %343 = vmatpush1.msra.mxu0 0.0
  %344 = vmatprep.subr.mxu0 0.0
  %345 = vmatpush1.msra.mxu0 0.0
  %346 = vmatprep.subr.mxu0 0.0
  %347 = vmatpush1.msra.mxu0 0.0
  %348 = vmatprep.subr.mxu0 0.0
  %349 = vmatpush1.msra.mxu0 0.0
  %350 = vmatprep.subr.mxu0 0.0
  %351 = vmatpush1.msra.mxu0 0.0
  %352 = vmatprep.subr.mxu0 0.0
  %353 = vmatpush1.msra.mxu0 0.0
  %354 = vmatprep.subr.mxu0 0.0
  %355 = vmatpush1.msra.mxu0 0.0
  %356 = vmatprep.subr.mxu0 0.0
  %357 = vmatpush1.msra.mxu0 0.0
  %358 = vmatprep.subr.mxu0 0.0
  %359 = vmatpush1.msra.mxu0 0.0
  %360 = vmatprep.subr.mxu0 0.0
  %361 = vmatpush1.msra.mxu0 0.0
  %362 = vmatprep.subr.mxu0 0.0
  %363 = vmatpush1.msra.mxu0 0.0
  %364 = vmatprep.subr.mxu0 0.0
  %365 = vmatpush1.msra.mxu0 0.0
  %366 = vmatprep.subr.mxu0 0.0
  %367 = vmatpush1.msra.mxu0 0.0
  %368 = vmatprep.subr.mxu0 0.0
  %369 = vmatpush1.msra.mxu0 0.0
  %370 = vmatprep.subr.mxu0 0.0
  %371 = vmatpush1.msra.mxu0 0.0
  %372 = vmatprep.subr.mxu0 0.0
  %373 = vmatpush1.msra.mxu0 0.0
  %374 = vmatprep.mubr.f32.mxu0 0.0
  %375 = vmatmul.mubr.f32.gmra.mrb[0].mxu0 %v115
  %v376 = vpop.f32.mrb[0].mxu0
  %v377 = vadd.f32 %v111, %v376
  %v378 = vpop.f32.mrb[0].mxu0
  %379 = vmatprep.mubr.f32.mxu0 0.0
  %380 = vmatmul.mubr.f32.gmra.mrb[0].mxu0 %v118
  %v381 = vpop.f32.mrb[0].mxu0
  %v382 = vadd.f32 %v111, %v381
  %v383 = vpop.f32.mrb[0].mxu0
  %384 = vmatprep.mubr.f32.mxu0 0.0
  %385 = vmatmul.mubr.f32.gmra.mrb[0].mxu0 %v121
  %v386 = vpop.f32.mrb[0].mxu0
  %v387 = vadd.f32 %v111, %v386
  %v388 = vpop.f32.mrb[0].mxu0
  %389 = vmatprep.mubr.f32.mxu0 0.0
  %390 = vmatmul.mubr.f32.gmra.mrb[0].mxu0 %v124
  %v391 = vpop.f32.mrb[0].mxu0
  %v392 = vadd.f32 %v111, %v391
  %v393 = vpop.f32.mrb[0].mxu0
  %394 = vmatprep.mubr.f32.mxu0 0.0
  %395 = vmatmul.mubr.f32.gmra.mrb[0].mxu0 %v127
  %v396 = vpop.f32.mrb[0].mxu0
  %v397 = vadd.f32 %v111, %v396
  %v398 = vpop.f32.mrb[0].mxu0
  %399 = vmatprep.mubr.f32.mxu0 0.0
  %400 = vmatmul.mubr.f32.gmra.mrb[0].mxu0 %v130
  %v401 = vpop.f32.mrb[0].mxu0
  %v402 = vadd.f32 %v111, %v401
  %v403 = vpop.f32.mrb[0].mxu0
  %404 = vmatprep.mubr.f32.mxu0 0.0
  %405 = vmatmul.mubr.f32.gmra.mrb[0].mxu0 %v133
  %v406 = vpop.f32.mrb[0].mxu0
  %v407 = vadd.f32 %v111, %v406
  %v408 = vpop.f32.mrb[0].mxu0
  %409 = vmatprep.mubr.f32.mxu0 0.0
  %410 = vmatmul.mubr.f32.gmra.mrb[0].mxu0 %v136
  %v411 = vpop.f32.mrb[0].mxu0
  %v412 = vadd.f32 %v111, %v411
  %v413 = vpop.f32.mrb[0].mxu0
  %414 = vmatprep.mubr.f32.mxu0 0.0
  %415 = vmatmul.mubr.f32.gmra.mrb[0].mxu0 %v139
  %v416 = vpop.f32.mrb[0].mxu0
  %v417 = vadd.f32 %v111, %v416
  %v418 = vpop.f32.mrb[0].mxu0
  %419 = vmatprep.mubr.f32.mxu0 0.0
  %420 = vmatmul.mubr.f32.gmra.mrb[0].mxu0 %v142
  %v421 = vpop.f32.mrb[0].mxu0
  %v422 = vadd.f32 %v111, %v421
  %v423 = vpop.f32.mrb[0].mxu0
  %424 = vmatprep.mubr.f32.mxu0 0.0
  %425 = vmatmul.mubr.f32.gmra.mrb[0].mxu0 %v145
  %v426 = vpop.f32.mrb[0].mxu0
  %v427 = vadd.f32 %v111, %v426
  %v428 = vpop.f32.mrb[0].mxu0
  %429 = vmatprep.mubr.f32.mxu0 0.0
  %430 = vmatmul.mubr.f32.gmra.mrb[0].mxu0 %v148
  %v431 = vpop.f32.mrb[0].mxu0
  %v432 = vadd.f32 %v111, %v431
  %v433 = vpop.f32.mrb[0].mxu0
  %434 = vmatprep.mubr.f32.mxu0 0.0
  %435 = vmatmul.mubr.f32.gmra.mrb[0].mxu0 %v151
  %v436 = vpop.f32.mrb[0].mxu0
  %v437 = vadd.f32 %v111, %v436
  %v438 = vpop.f32.mrb[0].mxu0
  %439 = vmatprep.mubr.f32.mxu0 0.0
  %440 = vmatmul.mubr.f32.gmra.mrb[0].mxu0 %v154
  %v441 = vpop.f32.mrb[0].mxu0
  %v442 = vadd.f32 %v111, %v441
  %v443 = vpop.f32.mrb[0].mxu0
  %444 = vmatprep.mubr.f32.mxu0 0.0
  %445 = vmatmul.mubr.f32.gmra.mrb[0].mxu0 %v157
  %v446 = vpop.f32.mrb[0].mxu0
  %v447 = vadd.f32 %v111, %v446
  %v448 = vpop.f32.mrb[0].mxu0
  %449 = vmatprep.mubr.f32.mxu0 0.0
  %450 = vmatmul.mubr.f32.gmra.mrb[0].mxu0 %v160
  %v451 = vpop.f32.mrb[0].mxu0
  %v452 = vadd.f32 %v111, %v451
  %v453 = vpop.f32.mrb[0].mxu0
  %454 = vmatprep.mubr.f32.mxu0 0.0
  %455 = vmatmul.mubr.f32.gmra.mrb[0].mxu0 %v163
  %v456 = vpop.f32.mrb[0].mxu0
  %v457 = vadd.f32 %v111, %v456
  %v458 = vpop.f32.mrb[0].mxu0
  %459 = vmatprep.mubr.f32.mxu0 0.0
  %460 = vmatmul.mubr.f32.gmra.mrb[0].mxu0 %v166
  %v461 = vpop.f32.mrb[0].mxu0
  %v462 = vadd.f32 %v111, %v461
  %v463 = vpop.f32.mrb[0].mxu0
  %464 = vmatprep.mubr.f32.mxu0 0.0
  %465 = vmatmul.mubr.f32.gmra.mrb[0].mxu0 %v169
  %v466 = vpop.f32.mrb[0].mxu0
  %v467 = vadd.f32 %v111, %v466
  %v468 = vpop.f32.mrb[0].mxu0
  %469 = vmatprep.mubr.f32.mxu0 0.0
  %470 = vmatmul.mubr.f32.gmra.mrb[0].mxu0 %v172
  %v471 = vpop.f32.mrb[0].mxu0
  %v472 = vadd.f32 %v111, %v471
  %v473 = vpop.f32.mrb[0].mxu0
  %474 = vmatprep.mubr.f32.mxu0 0.0
  %475 = vmatmul.mubr.f32.gmra.mrb[0].mxu0 %v175
  %v476 = vpop.f32.mrb[0].mxu0
  %v477 = vadd.f32 %v111, %v476
  %v478 = vpop.f32.mrb[0].mxu0
  %479 = vmatprep.mubr.f32.mxu0 0.0
  %480 = vmatmul.mubr.f32.gmra.mrb[0].mxu0 %v178
  %v481 = vpop.f32.mrb[0].mxu0
  %v482 = vadd.f32 %v111, %v481
  %v483 = vpop.f32.mrb[0].mxu0
  %484 = vmatprep.mubr.f32.mxu0 0.0
  %485 = vmatmul.mubr.f32.gmra.mrb[0].mxu0 %v181
  %v486 = vpop.f32.mrb[0].mxu0
  %v487 = vadd.f32 %v111, %v486
  %v488 = vpop.f32.mrb[0].mxu0
  %489 = vmatprep.mubr.f32.mxu0 0.0
  %490 = vmatmul.mubr.f32.gmra.mrb[0].mxu0 %v184
  %v491 = vpop.f32.mrb[0].mxu0
  %v492 = vadd.f32 %v111, %v491
  %v493 = vpop.f32.mrb[0].mxu0
  %494 = vmatprep.mubr.f32.mxu0 0.0
  %495 = vmatmul.mubr.f32.gmra.mrb[0].mxu0 %v187
  %v496 = vpop.f32.mrb[0].mxu0
  %v497 = vadd.f32 %v111, %v496
  %v498 = vpop.f32.mrb[0].mxu0
  %499 = vmatprep.mubr.f32.mxu0 0.0
  %500 = vmatmul.mubr.f32.gmra.mrb[0].mxu0 %v190
  %v501 = vpop.f32.mrb[0].mxu0
  %v502 = vadd.f32 %v111, %v501
  %v503 = vpop.f32.mrb[0].mxu0
  %504 = vmatprep.mubr.f32.mxu0 0.0
  %505 = vmatmul.mubr.f32.gmra.mrb[0].mxu0 %v193
  %v506 = vpop.f32.mrb[0].mxu0
  %v507 = vadd.f32 %v111, %v506
  %v508 = vpop.f32.mrb[0].mxu0
  %509 = vmatprep.mubr.f32.mxu0 0.0
  %510 = vmatmul.mubr.f32.gmra.mrb[0].mxu0 %v196
  %v511 = vpop.f32.mrb[0].mxu0
  %v512 = vadd.f32 %v111, %v511
  %v513 = vpop.f32.mrb[0].mxu0
  %514 = vmatprep.mubr.f32.mxu0 0.0
  %515 = vmatmul.mubr.f32.gmra.mrb[0].mxu0 %v199
  %v516 = vpop.f32.mrb[0].mxu0
  %v517 = vadd.f32 %v111, %v516
  %v518 = vpop.f32.mrb[0].mxu0
  %519 = vmatprep.mubr.f32.mxu0 0.0
  %520 = vmatmul.mubr.f32.gmra.mrb[0].mxu0 %v202
  %v521 = vpop.f32.mrb[0].mxu0
  %v522 = vadd.f32 %v111, %v521
  %v523 = vpop.f32.mrb[0].mxu0
  %524 = vmatprep.mubr.f32.mxu0 0.0
  %525 = vmatmul.mubr.f32.gmra.mrb[0].mxu0 %v205
  %v526 = vpop.f32.mrb[0].mxu0
  %v527 = vadd.f32 %v111, %v526
  %v528 = vpop.f32.mrb[0].mxu0
  %529 = vmatprep.mubr.f32.mxu0 0.0
  %530 = vmatmul.mubr.f32.gmra.mrb[0].mxu0 %v208
  %v531 = vpop.f32.mrb[0].mxu0
  %v532 = vadd.f32 %v111, %v531
  %v533 = vpop.f32.mrb[0].mxu0
  %534 = vmatprep.mubr.f32.mxu0 0.0
  %535 = vmatmul.mubr.f32.gmra.mrb[0].mxu0 %v211
  %v536 = vpop.f32.mrb[0].mxu0
  %v537 = vadd.f32 %v111, %v536
  %v538 = vpop.f32.mrb[0].mxu0
  %539 = vmatprep.mubr.f32.mxu0 0.0
  %540 = vmatmul.mubr.f32.gmra.mrb[0].mxu0 %v214
  %v541 = vpop.f32.mrb[0].mxu0
  %v542 = vadd.f32 %v111, %v541
  %v543 = vpop.f32.mrb[0].mxu0
  %544 = vmatprep.mubr.f32.mxu0 0.0
  %545 = vmatmul.mubr.f32.gmra.mrb[0].mxu0 %v217
  %v546 = vpop.f32.mrb[0].mxu0
  %v547 = vadd.f32 %v111, %v546
  %v548 = vpop.f32.mrb[0].mxu0
  %549 = vmatprep.mubr.f32.mxu0 0.0
  %550 = vmatmul.mubr.f32.gmra.mrb[0].mxu0 %v220
  %v551 = vpop.f32.mrb[0].mxu0
  %v552 = vadd.f32 %v111, %v551
  %v553 = vpop.f32.mrb[0].mxu0
  %554 = vmatprep.mubr.f32.mxu0 0.0
  %555 = vmatmul.mubr.f32.gmra.mrb[0].mxu0 %v223
  %v556 = vpop.f32.mrb[0].mxu0
  %v557 = vadd.f32 %v111, %v556
  %v558 = vpop.f32.mrb[0].mxu0
  %559 = vmatprep.mubr.f32.mxu0 0.0
  %560 = vmatmul.mubr.f32.gmra.mrb[0].mxu0 %v226
  %v561 = vpop.f32.mrb[0].mxu0
  %v562 = vadd.f32 %v111, %v561
  %v563 = vpop.f32.mrb[0].mxu0
  %564 = vmatprep.mubr.f32.mxu0 0.0
  %565 = vmatmul.mubr.f32.gmra.mrb[0].mxu0 %v229
  %v566 = vpop.f32.mrb[0].mxu0
  %v567 = vadd.f32 %v111, %v566
  %v568 = vpop.f32.mrb[0].mxu0
  %569 = vmatprep.mubr.f32.mxu0 0.0
  %570 = vmatmul.mubr.f32.gmra.mrb[0].mxu0 %v232
  %v571 = vpop.f32.mrb[0].mxu0
  %v572 = vadd.f32 %v111, %v571
  %v573 = vpop.f32.mrb[0].mxu0
  %574 = vmatprep.mubr.f32.mxu0 0.0
  %575 = vmatmul.mubr.f32.gmra.mrb[0].mxu0 %v235
  %v576 = vpop.f32.mrb[0].mxu0
  %v577 = vadd.f32 %v111, %v576
  %v578 = vpop.f32.mrb[0].mxu0
  %579 = vmatprep.mubr.f32.mxu0 0.0
  %580 = vmatmul.mubr.f32.gmra.mrb[0].mxu0 %v238
  %v581 = vpop.f32.mrb[0].mxu0
  %v582 = vadd.f32 %v111, %v581
  %v583 = vpop.f32.mrb[0].mxu0
  %584 = vmatprep.mubr.f32.mxu0 0.0
  %585 = vmatmul.mubr.f32.gmra.mrb[0].mxu0 %v241
  %v586 = vpop.f32.mrb[0].mxu0
  %v587 = vadd.f32 %v111, %v586
  %v588 = vpop.f32.mrb[0].mxu0
  %589 = vmatprep.mubr.f32.mxu0 0.0
  %590 = vmatmul.mubr.f32.gmra.mrb[0].mxu0 %v244
  %v591 = vpop.f32.mrb[0].mxu0
  %v592 = vadd.f32 %v111, %v591
  %v593 = vpop.f32.mrb[0].mxu0
  %594 = vmatprep.mubr.f32.mxu0 0.0
  %595 = vmatmul.mubr.f32.gmra.mrb[0].mxu0 %v247
  %v596 = vpop.f32.mrb[0].mxu0
  %v597 = vadd.f32 %v111, %v596
  %v598 = vpop.f32.mrb[0].mxu0
  %599 = vmatprep.mubr.f32.mxu0 0.0
  %600 = vmatmul.mubr.f32.gmra.mrb[0].mxu0 %v250
  %v601 = vpop.f32.mrb[0].mxu0
  %v602 = vadd.f32 %v111, %v601
  %v603 = vpop.f32.mrb[0].mxu0
  %604 = vmatprep.mubr.f32.mxu0 0.0
  %605 = vmatmul.mubr.f32.gmra.mrb[0].mxu0 %v253
  %v606 = vpop.f32.mrb[0].mxu0
  %v607 = vadd.f32 %v111, %v606
  %v608 = vpop.f32.mrb[0].mxu0
  %609 = vmatprep.mubr.f32.mxu0 0.0
  %610 = vmatmul.mubr.f32.gmra.mrb[0].mxu0 %v256
  %v611 = vpop.f32.mrb[0].mxu0
  %v612 = vadd.f32 %v111, %v611
  %v613 = vpop.f32.mrb[0].mxu0
  %614 = vmatprep.mubr.f32.mxu0 0.0
  %615 = vmatmul.mubr.f32.gmra.mrb[0].mxu0 %v259
  %v616 = vpop.f32.mrb[0].mxu0
  %v617 = vadd.f32 %v111, %v616
  %v618 = vpop.f32.mrb[0].mxu0
  %619 = vmatprep.mubr.f32.mxu0 0.0
  %620 = vmatmul.mubr.f32.gmra.mrb[0].mxu0 %v262
  %v621 = vpop.f32.mrb[0].mxu0
  %v622 = vadd.f32 %v111, %v621
  %v623 = vpop.f32.mrb[0].mxu0
  %624 = vmatprep.mubr.f32.mxu0 0.0
  %625 = vmatmul.mubr.f32.gmra.mrb[0].mxu0 %v265
  %v626 = vpop.f32.mrb[0].mxu0
  %v627 = vadd.f32 %v111, %v626
  %v628 = vpop.f32.mrb[0].mxu0
  %629 = vmatprep.mubr.f32.mxu0 0.0
  %630 = vmatmul.mubr.f32.gmra.mrb[0].mxu0 %v268
  %v631 = vpop.f32.mrb[0].mxu0
  %v632 = vadd.f32 %v111, %v631
  %v633 = vpop.f32.mrb[0].mxu0
  %634 = vmatprep.mubr.f32.mxu0 0.0
  %635 = vmatmul.mubr.f32.gmra.mrb[0].mxu0 %v271
  %v636 = vpop.f32.mrb[0].mxu0
  %v637 = vadd.f32 %v111, %v636
  %v638 = vpop.f32.mrb[0].mxu0
  %639 = vmatprep.mubr.f32.mxu0 0.0
  %640 = vmatmul.mubr.f32.gmra.mrb[0].mxu0 %v274
  %v641 = vpop.f32.mrb[0].mxu0
  %v642 = vadd.f32 %v111, %v641
  %v643 = vpop.f32.mrb[0].mxu0
  %644 = vmatprep.mubr.f32.mxu0 0.0
  %645 = vmatmul.mubr.f32.gmra.mrb[0].mxu0 %v277
  %v646 = vpop.f32.mrb[0].mxu0
  %v647 = vadd.f32 %v111, %v646
  %v648 = vpop.f32.mrb[0].mxu0
  %649 = vmatprep.mubr.f32.mxu0 0.0
  %650 = vmatmul.mubr.f32.gmra.mrb[0].mxu0 %v280
  %v651 = vpop.f32.mrb[0].mxu0
  %v652 = vadd.f32 %v111, %v651
  %v653 = vpop.f32.mrb[0].mxu0
  %654 = vmatprep.mubr.f32.mxu0 0.0
  %655 = vmatmul.mubr.f32.gmra.mrb[0].mxu0 %v283
  %v656 = vpop.f32.mrb[0].mxu0
  %v657 = vadd.f32 %v111, %v656
  %v658 = vpop.f32.mrb[0].mxu0
  %659 = vmatprep.mubr.f32.mxu0 0.0
  %660 = vmatmul.mubr.f32.gmra.mrb[0].mxu0 %v286
  %v661 = vpop.f32.mrb[0].mxu0
  %v662 = vadd.f32 %v111, %v661
  %v663 = vpop.f32.mrb[0].mxu0
  %664 = vmatprep.mubr.f32.mxu0 0.0
  %665 = vmatmul.mubr.f32.gmra.mrb[0].mxu0 %v289
  %v666 = vpop.f32.mrb[0].mxu0
  %v667 = vadd.f32 %v111, %v666
  %v668 = vpop.f32.mrb[0].mxu0
  %669 = vmatprep.mubr.f32.mxu0 0.0
  %670 = vmatmul.mubr.f32.gmra.mrb[0].mxu0 %v292
  %v671 = vpop.f32.mrb[0].mxu0
  %v672 = vadd.f32 %v111, %v671
  %v673 = vpop.f32.mrb[0].mxu0
  %674 = vmatprep.mubr.f32.mxu0 0.0
  %675 = vmatmul.mubr.f32.gmra.mrb[0].mxu0 %v295
  %v676 = vpop.f32.mrb[0].mxu0
  %v677 = vadd.f32 %v111, %v676
  %v678 = vpop.f32.mrb[0].mxu0
  %679 = vmatprep.mubr.f32.mxu0 0.0
  %680 = vmatmul.mubr.f32.gmra.mrb[0].mxu0 %v298
  %v681 = vpop.f32.mrb[0].mxu0
  %v682 = vadd.f32 %v111, %v681
  %v683 = vpop.f32.mrb[0].mxu0
  %684 = vmatprep.mubr.f32.mxu0 0.0
  %685 = vmatmul.mubr.f32.gmra.mrb[0].mxu0 %v301
  %v686 = vpop.f32.mrb[0].mxu0
  %v687 = vadd.f32 %v111, %v686
  %v688 = vpop.f32.mrb[0].mxu0
  %689 = vmatprep.mubr.f32.mxu0 0.0
  %690 = vmatmul.mubr.f32.gmra.mrb[0].mxu0 %v304
  %v691 = vpop.f32.mrb[0].mxu0
  %v692 = vadd.f32 %v111, %v691
  %v693 = vpop.f32.mrb[0].mxu0
  %694 = vdwg.mxu0
  %v695 = vmax.f32 %v377, 0.0
  %v696 = vmax.f32 %v382, 0.0
  %v697 = vmax.f32 %v387, 0.0
  %v698 = vmax.f32 %v392, 0.0
  %v699 = vmax.f32 %v397, 0.0
  %v700 = vmax.f32 %v402, 0.0
  %v701 = vmax.f32 %v407, 0.0
  %v702 = vmax.f32 %v412, 0.0
  %v703 = vmax.f32 %v417, 0.0
  %v704 = vmax.f32 %v422, 0.0
  %v705 = vmax.f32 %v427, 0.0
  %v706 = vmax.f32 %v432, 0.0
  %v707 = vmax.f32 %v437, 0.0
  %v708 = vmax.f32 %v442, 0.0
  %v709 = vmax.f32 %v447, 0.0
  %v710 = vmax.f32 %v452, 0.0
  %v711 = vmax.f32 %v457, 0.0
  %v712 = vmax.f32 %v462, 0.0
  %v713 = vmax.f32 %v467, 0.0
  %v714 = vmax.f32 %v472, 0.0
  %v715 = vmax.f32 %v477, 0.0
  %v716 = vmax.f32 %v482, 0.0
  %v717 = vmax.f32 %v487, 0.0
  %v718 = vmax.f32 %v492, 0.0
  %v719 = vmax.f32 %v497, 0.0
  %v720 = vmax.f32 %v502, 0.0
  %v721 = vmax.f32 %v507, 0.0
  %v722 = vmax.f32 %v512, 0.0
  %v723 = vmax.f32 %v517, 0.0
  %v724 = vmax.f32 %v522, 0.0
  %v725 = vmax.f32 %v527, 0.0
  %v726 = vmax.f32 %v532, 0.0
  %v727 = vmax.f32 %v537, 0.0
  %v728 = vmax.f32 %v542, 0.0
  %v729 = vmax.f32 %v547, 0.0
  %v730 = vmax.f32 %v552, 0.0
  %v731 = vmax.f32 %v557, 0.0
  %v732 = vmax.f32 %v562, 0.0
  %v733 = vmax.f32 %v567, 0.0
  %v734 = vmax.f32 %v572, 0.0
  %v735 = vmax.f32 %v577, 0.0
  %v736 = vmax.f32 %v582, 0.0
  %v737 = vmax.f32 %v587, 0.0
  %v738 = vmax.f32 %v592, 0.0
  %v739 = vmax.f32 %v597, 0.0
  %v740 = vmax.f32 %v602, 0.0
  %v741 = vmax.f32 %v607, 0.0
  %v742 = vmax.f32 %v612, 0.0
  %v743 = vmax.f32 %v617, 0.0
  %v744 = vmax.f32 %v622, 0.0
  %v745 = vmax.f32 %v627, 0.0
  %v746 = vmax.f32 %v632, 0.0
  %v747 = vmax.f32 %v637, 0.0
  %v748 = vmax.f32 %v642, 0.0
  %v749 = vmax.f32 %v647, 0.0
  %v750 = vmax.f32 %v652, 0.0
  %v751 = vmax.f32 %v657, 0.0
  %v752 = vmax.f32 %v662, 0.0
  %v753 = vmax.f32 %v667, 0.0
  %v754 = vmax.f32 %v672, 0.0
  %v755 = vmax.f32 %v677, 0.0
  %v756 = vmax.f32 %v682, 0.0
  %v757 = vmax.f32 %v687, 0.0
  %v758 = vmax.f32 %v692, 0.0
  %v759 = vadd.f32 %v695, %v696
  %v760 = vadd.f32 %v759, %v697
  %v761 = vadd.f32 %v760, %v698
  %v762 = vadd.f32 %v761, %v699
  %v763 = vadd.f32 %v762, %v700
  %v764 = vadd.f32 %v763, %v701
  %v765 = vadd.f32 %v764, %v702
  %v766 = vadd.f32 %v765, %v703
  %v767 = vadd.f32 %v766, %v704
  %v768 = vadd.f32 %v767, %v705
  %v769 = vadd.f32 %v768, %v706
  %v770 = vadd.f32 %v769, %v707
  %v771 = vadd.f32 %v770, %v708
  %v772 = vadd.f32 %v771, %v709
  %v773 = vadd.f32 %v772, %v710
  %v774 = vadd.f32 %v773, %v711
  %v775 = vadd.f32 %v774, %v712
  %v776 = vadd.f32 %v775, %v713
  %v777 = vadd.f32 %v776, %v714
  %v778 = vadd.f32 %v777, %v715
  %v779 = vadd.f32 %v778, %v716
  %v780 = vadd.f32 %v779, %v717
  %v781 = vadd.f32 %v780, %v718
  %v782 = vadd.f32 %v781, %v719
  %v783 = vadd.f32 %v782, %v720
  %v784 = vadd.f32 %v783, %v721
  %v785 = vadd.f32 %v784, %v722
  %v786 = vadd.f32 %v785, %v723
  %v787 = vadd.f32 %v786, %v724
  %v788 = vadd.f32 %v787, %v725
  %v789 = vadd.f32 %v788, %v726
  %v790 = vrot.slane %v789, 4
  %v791 = vadd.f32 %v789, %v790
  %v792 = vrot.slane %v791, 2
  %v793 = vadd.f32 %v791, %v792
  %v794 = vrot.slane %v793, 1
  %v795 = vadd.f32 %v793, %v794
  %v796 = vadd.f32 %v727, %v728
  %v797 = vadd.f32 %v796, %v729
  %v798 = vadd.f32 %v797, %v730
  %v799 = vadd.f32 %v798, %v731
  %v800 = vadd.f32 %v799, %v732
  %v801 = vadd.f32 %v800, %v733
  %v802 = vadd.f32 %v801, %v734
  %v803 = vadd.f32 %v802, %v735
  %v804 = vadd.f32 %v803, %v736
  %v805 = vadd.f32 %v804, %v737
  %v806 = vadd.f32 %v805, %v738
  %v807 = vadd.f32 %v806, %v739
  %v808 = vadd.f32 %v807, %v740
  %v809 = vadd.f32 %v808, %v741
  %v810 = vadd.f32 %v809, %v742
  %v811 = vadd.f32 %v810, %v743
  %v812 = vadd.f32 %v811, %v744
  %v813 = vadd.f32 %v812, %v745
  %v814 = vadd.f32 %v813, %v746
  %v815 = vadd.f32 %v814, %v747
  %v816 = vadd.f32 %v815, %v748
  %v817 = vadd.f32 %v816, %v749
  %v818 = vadd.f32 %v817, %v750
  %v819 = vadd.f32 %v818, %v751
  %v820 = vadd.f32 %v819, %v752
  %v821 = vadd.f32 %v820, %v753
  %v822 = vadd.f32 %v821, %v754
  %v823 = vadd.f32 %v822, %v755
  %v824 = vadd.f32 %v823, %v756
  %v825 = vadd.f32 %v824, %v757
  %v826 = vadd.f32 %v825, %v758
  %v827 = vrot.slane %v826, 4
  %v828 = vadd.f32 %v826, %v827
  %v829 = vrot.slane %v828, 2
  %v830 = vadd.f32 %v828, %v829
  %v831 = vrot.slane %v830, 1
  %v832 = vadd.f32 %v830, %v831
  %v833 = vmul.f32 %v795, 0.00390625
  %v834 = vmul.f32 %v832, 0.00390625
  %v835 = vld [vmem:[%s3] sm:$0xff]
  %v836 = vld [vmem:[%s3 + $0x8] sm:$0xff]
  %v837 = vld [vmem:[%s3 + $0x10] sm:$0xff]
  %v838 = vld [vmem:[%s3 + $0x18] sm:$0xff]
  %v839 = vld [vmem:[%s3 + $0x20] sm:$0xff]
  %v840 = vld [vmem:[%s3 + $0x28] sm:$0xff]
  %v841 = vld [vmem:[%s3 + $0x30] sm:$0xff]
  %v842 = vld [vmem:[%s3 + $0x38] sm:$0xff]
  %v843 = vld [vmem:[%s3 + $0x40] sm:$0xff]
  %v844 = vld [vmem:[%s3 + $0x48] sm:$0xff]
  %v845 = vld [vmem:[%s3 + $0x50] sm:$0xff]
  %v846 = vld [vmem:[%s3 + $0x58] sm:$0xff]
  %v847 = vld [vmem:[%s3 + $0x60] sm:$0xff]
  %v848 = vld [vmem:[%s3 + $0x68] sm:$0xff]
  %v849 = vld [vmem:[%s3 + $0x70] sm:$0xff]
  %v850 = vld [vmem:[%s3 + $0x78] sm:$0xff]
  %v851 = vld [vmem:[%s4] sm:$0x1]
  %v853 = vlaneseq
  %v854 = vshrl.u32 %v853, 7
  %v855 = vsub.s32 0, %v854
  %v856 = vrot.slane %v851, %v855
  %vm860 = vcmask 1041409
  %v861 = vsel %vm860, %v834, %v833
  %863 = vmatprep.subr.mxu0 0.0
  %864 = vmatpush1.msra.mxu0 %v835
  %865 = vmatprep.subr.mxu0 0.0
  %866 = vmatpush1.msra.mxu0 %v836
  %867 = vmatprep.subr.mxu0 0.0
  %868 = vmatpush1.msra.mxu0 %v837
  %869 = vmatprep.subr.mxu0 0.0
  %870 = vmatpush1.msra.mxu0 %v838
  %871 = vmatprep.subr.mxu0 0.0
  %872 = vmatpush1.msra.mxu0 %v839
  %873 = vmatprep.subr.mxu0 0.0
  %874 = vmatpush1.msra.mxu0 %v840
  %875 = vmatprep.subr.mxu0 0.0
  %876 = vmatpush1.msra.mxu0 %v841
  %877 = vmatprep.subr.mxu0 0.0
  %878 = vmatpush1.msra.mxu0 %v842
  %879 = vmatprep.subr.mxu0 0.0
  %880 = vmatpush1.msra.mxu0 %v843
  %881 = vmatprep.subr.mxu0 0.0
  %882 = vmatpush1.msra.mxu0 %v844
  %883 = vmatprep.subr.mxu0 0.0
  %884 = vmatpush1.msra.mxu0 %v845
  %885 = vmatprep.subr.mxu0 0.0
  %886 = vmatpush1.msra.mxu0 %v846
  %887 = vmatprep.subr.mxu0 0.0
  %888 = vmatpush1.msra.mxu0 %v847
  %889 = vmatprep.subr.mxu0 0.0
  %890 = vmatpush1.msra.mxu0 %v848
  %891 = vmatprep.subr.mxu0 0.0
  %892 = vmatpush1.msra.mxu0 %v849
  %893 = vmatprep.subr.mxu0 0.0
  %894 = vmatpush1.msra.mxu0 %v850
  %895 = vmatprep.subr.mxu0 0.0
  %896 = vmatpush1.msra.mxu0 0.0
  %897 = vmatprep.subr.mxu0 0.0
  %898 = vmatpush1.msra.mxu0 0.0
  %899 = vmatprep.subr.mxu0 0.0
  %900 = vmatpush1.msra.mxu0 0.0
  %901 = vmatprep.subr.mxu0 0.0
  %902 = vmatpush1.msra.mxu0 0.0
  %903 = vmatprep.subr.mxu0 0.0
  %904 = vmatpush1.msra.mxu0 0.0
  %905 = vmatprep.subr.mxu0 0.0
  %906 = vmatpush1.msra.mxu0 0.0
  %907 = vmatprep.subr.mxu0 0.0
  %908 = vmatpush1.msra.mxu0 0.0
  %909 = vmatprep.subr.mxu0 0.0
  %910 = vmatpush1.msra.mxu0 0.0
  %911 = vmatprep.subr.mxu0 0.0
  %912 = vmatpush1.msra.mxu0 0.0
  %913 = vmatprep.subr.mxu0 0.0
  %914 = vmatpush1.msra.mxu0 0.0
  %915 = vmatprep.subr.mxu0 0.0
  %916 = vmatpush1.msra.mxu0 0.0
  %917 = vmatprep.subr.mxu0 0.0
  %918 = vmatpush1.msra.mxu0 0.0
  %919 = vmatprep.subr.mxu0 0.0
  %920 = vmatpush1.msra.mxu0 0.0
  %921 = vmatprep.subr.mxu0 0.0
  %922 = vmatpush1.msra.mxu0 0.0
  %923 = vmatprep.subr.mxu0 0.0
  %924 = vmatpush1.msra.mxu0 0.0
  %925 = vmatprep.subr.mxu0 0.0
  %926 = vmatpush1.msra.mxu0 0.0
  %927 = vmatprep.mubr.f32.mxu0 0.0
  %928 = vmatmul.mubr.f32.gmra.mrb[0].mxu0 %v861
  %v929 = vpop.f32.mrb[0].mxu0
  %v930 = vadd.f32 %v856, %v929
  %v931 = vpop.f32.mrb[0].mxu0
  %932 = vdwg.mxu0
  %v933 = vmax.f32 %v930, 0.0
  %v934 = vld [vmem:[%s5] sm:$0xff]
  %v935 = vld [vmem:[%s5 + $0x8] sm:$0xff]
  %v936 = vld [vmem:[%s5 + $0x10] sm:$0xff]
  %v937 = vld [vmem:[%s5 + $0x18] sm:$0xff]
  %v938 = vld [vmem:[%s5 + $0x20] sm:$0xff]
  %v939 = vld [vmem:[%s5 + $0x28] sm:$0xff]
  %v940 = vld [vmem:[%s5 + $0x30] sm:$0xff]
  %v941 = vld [vmem:[%s5 + $0x38] sm:$0xff]
  %v942 = vld [vmem:[%s5 + $0x40] sm:$0xff]
  %v943 = vld [vmem:[%s5 + $0x48] sm:$0xff]
  %v944 = vld [vmem:[%s5 + $0x50] sm:$0xff]
  %v945 = vld [vmem:[%s5 + $0x58] sm:$0xff]
  %v946 = vld [vmem:[%s5 + $0x60] sm:$0xff]
  %v947 = vld [vmem:[%s5 + $0x68] sm:$0xff]
  %v948 = vld [vmem:[%s5 + $0x70] sm:$0xff]
  %v949 = vld [vmem:[%s5 + $0x78] sm:$0xff]
  %v950 = vld [vmem:[%s5 + $0x80] sm:$0xff]
  %v951 = vld [vmem:[%s5 + $0x88] sm:$0xff]
  %v952 = vld [vmem:[%s5 + $0x90] sm:$0xff]
  %v953 = vld [vmem:[%s5 + $0x98] sm:$0xff]
  %v954 = vld [vmem:[%s5 + $0xa0] sm:$0xff]
  %v955 = vld [vmem:[%s5 + $0xa8] sm:$0xff]
  %v956 = vld [vmem:[%s5 + $0xb0] sm:$0xff]
  %v957 = vld [vmem:[%s5 + $0xb8] sm:$0xff]
  %v958 = vld [vmem:[%s5 + $0xc0] sm:$0xff]
  %v959 = vld [vmem:[%s5 + $0xc8] sm:$0xff]
  %v960 = vld [vmem:[%s5 + $0xd0] sm:$0xff]
  %v961 = vld [vmem:[%s5 + $0xd8] sm:$0xff]
  %v962 = vld [vmem:[%s5 + $0xe0] sm:$0xff]
  %v963 = vld [vmem:[%s5 + $0xe8] sm:$0xff]
  %v964 = vld [vmem:[%s5 + $0xf0] sm:$0xff]
  %v965 = vld [vmem:[%s5 + $0xf8] sm:$0xff]
  %v966 = vld [vmem:[%s5 + $0x100] sm:$0xff]
  %v967 = vld [vmem:[%s5 + $0x108] sm:$0xff]
  %v968 = vld [vmem:[%s5 + $0x110] sm:$0xff]
  %v969 = vld [vmem:[%s5 + $0x118] sm:$0xff]
  %v970 = vld [vmem:[%s5 + $0x120] sm:$0xff]
  %v971 = vld [vmem:[%s5 + $0x128] sm:$0xff]
  %v972 = vld [vmem:[%s5 + $0x130] sm:$0xff]
  %v973 = vld [vmem:[%s5 + $0x138] sm:$0xff]
  %v974 = vld [vmem:[%s5 + $0x140] sm:$0xff]
  %v975 = vld [vmem:[%s5 + $0x148] sm:$0xff]
  %v976 = vld [vmem:[%s5 + $0x150] sm:$0xff]
  %v977 = vld [vmem:[%s5 + $0x158] sm:$0xff]
  %v978 = vld [vmem:[%s5 + $0x160] sm:$0xff]
  %v979 = vld [vmem:[%s5 + $0x168] sm:$0xff]
  %v980 = vld [vmem:[%s5 + $0x170] sm:$0xff]
  %v981 = vld [vmem:[%s5 + $0x178] sm:$0xff]
  %v982 = vld [vmem:[%s5 + $0x180] sm:$0xff]
  %v983 = vld [vmem:[%s5 + $0x188] sm:$0xff]
  %v984 = vld [vmem:[%s5 + $0x190] sm:$0xff]
  %v985 = vld [vmem:[%s5 + $0x198] sm:$0xff]
  %v986 = vld [vmem:[%s5 + $0x1a0] sm:$0xff]
  %v987 = vld [vmem:[%s5 + $0x1a8] sm:$0xff]
  %v988 = vld [vmem:[%s5 + $0x1b0] sm:$0xff]
  %v989 = vld [vmem:[%s5 + $0x1b8] sm:$0xff]
  %v990 = vld [vmem:[%s5 + $0x1c0] sm:$0xff]
  %v991 = vld [vmem:[%s5 + $0x1c8] sm:$0xff]
  %v992 = vld [vmem:[%s5 + $0x1d0] sm:$0xff]
  %v993 = vld [vmem:[%s5 + $0x1d8] sm:$0xff]
  %v994 = vld [vmem:[%s5 + $0x1e0] sm:$0xff]
  %v995 = vld [vmem:[%s5 + $0x1e8] sm:$0xff]
  %v996 = vld [vmem:[%s5 + $0x1f0] sm:$0xff]
  %v997 = vld [vmem:[%s5 + $0x1f8] sm:$0xff]
  %v998 = vld [vmem:[%s5 + $0x200] sm:$0xff]
  %v999 = vld [vmem:[%s5 + $0x208] sm:$0xff]
  %v1000 = vld [vmem:[%s5 + $0x210] sm:$0xff]
  %v1001 = vld [vmem:[%s5 + $0x218] sm:$0xff]
  %v1002 = vld [vmem:[%s5 + $0x220] sm:$0xff]
  %v1003 = vld [vmem:[%s5 + $0x228] sm:$0xff]
  %v1004 = vld [vmem:[%s5 + $0x230] sm:$0xff]
  %v1005 = vld [vmem:[%s5 + $0x238] sm:$0xff]
  %v1006 = vld [vmem:[%s5 + $0x240] sm:$0xff]
  %v1007 = vld [vmem:[%s5 + $0x248] sm:$0xff]
  %v1008 = vld [vmem:[%s5 + $0x250] sm:$0xff]
  %v1009 = vld [vmem:[%s5 + $0x258] sm:$0xff]
  %v1010 = vld [vmem:[%s5 + $0x260] sm:$0xff]
  %v1011 = vld [vmem:[%s5 + $0x268] sm:$0xff]
  %v1012 = vld [vmem:[%s5 + $0x270] sm:$0xff]
  %v1013 = vld [vmem:[%s5 + $0x278] sm:$0xff]
  %v1014 = vld [vmem:[%s5 + $0x280] sm:$0xff]
  %v1015 = vld [vmem:[%s5 + $0x288] sm:$0xff]
  %v1016 = vld [vmem:[%s5 + $0x290] sm:$0xff]
  %v1017 = vld [vmem:[%s5 + $0x298] sm:$0xff]
  %v1018 = vld [vmem:[%s5 + $0x2a0] sm:$0xff]
  %v1019 = vld [vmem:[%s5 + $0x2a8] sm:$0xff]
  %v1020 = vld [vmem:[%s5 + $0x2b0] sm:$0xff]
  %v1021 = vld [vmem:[%s5 + $0x2b8] sm:$0xff]
  %v1022 = vld [vmem:[%s5 + $0x2c0] sm:$0xff]
  %v1023 = vld [vmem:[%s5 + $0x2c8] sm:$0xff]
  %v1024 = vld [vmem:[%s5 + $0x2d0] sm:$0xff]
  %v1025 = vld [vmem:[%s5 + $0x2d8] sm:$0xff]
  %v1026 = vld [vmem:[%s5 + $0x2e0] sm:$0xff]
  %v1027 = vld [vmem:[%s5 + $0x2e8] sm:$0xff]
  %v1028 = vld [vmem:[%s5 + $0x2f0] sm:$0xff]
  %v1029 = vld [vmem:[%s5 + $0x2f8] sm:$0xff]
  %v1030 = vld [vmem:[%s5 + $0x300] sm:$0xff]
  %v1031 = vld [vmem:[%s5 + $0x308] sm:$0xff]
  %v1032 = vld [vmem:[%s5 + $0x310] sm:$0xff]
  %v1033 = vld [vmem:[%s5 + $0x318] sm:$0xff]
  %v1034 = vld [vmem:[%s5 + $0x320] sm:$0xff]
  %v1035 = vld [vmem:[%s5 + $0x328] sm:$0xff]
  %v1036 = vld [vmem:[%s5 + $0x330] sm:$0xff]
  %v1037 = vld [vmem:[%s5 + $0x338] sm:$0xff]
  %v1038 = vld [vmem:[%s5 + $0x340] sm:$0xff]
  %v1039 = vld [vmem:[%s5 + $0x348] sm:$0xff]
  %v1040 = vld [vmem:[%s5 + $0x350] sm:$0xff]
  %v1041 = vld [vmem:[%s5 + $0x358] sm:$0xff]
  %v1042 = vld [vmem:[%s5 + $0x360] sm:$0xff]
  %v1043 = vld [vmem:[%s5 + $0x368] sm:$0xff]
  %v1044 = vld [vmem:[%s5 + $0x370] sm:$0xff]
  %v1045 = vld [vmem:[%s5 + $0x378] sm:$0xff]
  %v1046 = vld [vmem:[%s5 + $0x380] sm:$0xff]
  %v1047 = vld [vmem:[%s5 + $0x388] sm:$0xff]
  %v1048 = vld [vmem:[%s5 + $0x390] sm:$0xff]
  %v1049 = vld [vmem:[%s5 + $0x398] sm:$0xff]
  %v1050 = vld [vmem:[%s5 + $0x3a0] sm:$0xff]
  %v1051 = vld [vmem:[%s5 + $0x3a8] sm:$0xff]
  %v1052 = vld [vmem:[%s5 + $0x3b0] sm:$0xff]
  %v1053 = vld [vmem:[%s5 + $0x3b8] sm:$0xff]
  %v1054 = vld [vmem:[%s5 + $0x3c0] sm:$0xff]
  %v1055 = vld [vmem:[%s5 + $0x3c8] sm:$0xff]
  %v1056 = vld [vmem:[%s5 + $0x3d0] sm:$0xff]
  %v1057 = vld [vmem:[%s5 + $0x3d8] sm:$0xff]
  %v1058 = vld [vmem:[%s5 + $0x3e0] sm:$0xff]
  %v1059 = vld [vmem:[%s5 + $0x3e8] sm:$0xff]
  %v1060 = vld [vmem:[%s5 + $0x3f0] sm:$0xff]
  %v1061 = vld [vmem:[%s5 + $0x3f8] sm:$0xff]
  %v1062 = vld [vmem:[%s5 + $0x400] sm:$0xff]
  %v1063 = vld [vmem:[%s5 + $0x408] sm:$0xff]
  %v1064 = vld [vmem:[%s5 + $0x410] sm:$0xff]
  %v1065 = vld [vmem:[%s5 + $0x418] sm:$0xff]
  %v1066 = vld [vmem:[%s5 + $0x420] sm:$0xff]
  %v1067 = vld [vmem:[%s5 + $0x428] sm:$0xff]
  %v1068 = vld [vmem:[%s5 + $0x430] sm:$0xff]
  %v1069 = vld [vmem:[%s5 + $0x438] sm:$0xff]
  %v1070 = vld [vmem:[%s5 + $0x440] sm:$0xff]
  %v1071 = vld [vmem:[%s5 + $0x448] sm:$0xff]
  %v1072 = vld [vmem:[%s5 + $0x450] sm:$0xff]
  %v1073 = vld [vmem:[%s5 + $0x458] sm:$0xff]
  %v1074 = vld [vmem:[%s5 + $0x460] sm:$0xff]
  %v1075 = vld [vmem:[%s5 + $0x468] sm:$0xff]
  %v1076 = vld [vmem:[%s5 + $0x470] sm:$0xff]
  %v1077 = vld [vmem:[%s5 + $0x478] sm:$0xff]
  %v1078 = vld [vmem:[%s5 + $0x480] sm:$0xff]
  %v1079 = vld [vmem:[%s5 + $0x488] sm:$0xff]
  %v1080 = vld [vmem:[%s5 + $0x490] sm:$0xff]
  %v1081 = vld [vmem:[%s5 + $0x498] sm:$0xff]
  %v1082 = vld [vmem:[%s5 + $0x4a0] sm:$0xff]
  %v1083 = vld [vmem:[%s5 + $0x4a8] sm:$0xff]
  %v1084 = vld [vmem:[%s5 + $0x4b0] sm:$0xff]
  %v1085 = vld [vmem:[%s5 + $0x4b8] sm:$0xff]
  %v1086 = vld [vmem:[%s5 + $0x4c0] sm:$0xff]
  %v1087 = vld [vmem:[%s5 + $0x4c8] sm:$0xff]
  %v1088 = vld [vmem:[%s5 + $0x4d0] sm:$0xff]
  %v1089 = vld [vmem:[%s5 + $0x4d8] sm:$0xff]
  %v1090 = vld [vmem:[%s5 + $0x4e0] sm:$0xff]
  %v1091 = vld [vmem:[%s5 + $0x4e8] sm:$0xff]
  %v1092 = vld [vmem:[%s5 + $0x4f0] sm:$0xff]
  %v1093 = vld [vmem:[%s5 + $0x4f8] sm:$0xff]
  %v1094 = vld [vmem:[%s5 + $0x500] sm:$0xff]
  %v1095 = vld [vmem:[%s5 + $0x508] sm:$0xff]
  %v1096 = vld [vmem:[%s5 + $0x510] sm:$0xff]
  %v1097 = vld [vmem:[%s5 + $0x518] sm:$0xff]
  %v1098 = vld [vmem:[%s5 + $0x520] sm:$0xff]
  %v1099 = vld [vmem:[%s5 + $0x528] sm:$0xff]
  %v1100 = vld [vmem:[%s5 + $0x530] sm:$0xff]
  %v1101 = vld [vmem:[%s5 + $0x538] sm:$0xff]
  %v1102 = vld [vmem:[%s5 + $0x540] sm:$0xff]
  %v1103 = vld [vmem:[%s5 + $0x548] sm:$0xff]
  %v1104 = vld [vmem:[%s5 + $0x550] sm:$0xff]
  %v1105 = vld [vmem:[%s5 + $0x558] sm:$0xff]
  %v1106 = vld [vmem:[%s5 + $0x560] sm:$0xff]
  %v1107 = vld [vmem:[%s5 + $0x568] sm:$0xff]
  %v1108 = vld [vmem:[%s5 + $0x570] sm:$0xff]
  %v1109 = vld [vmem:[%s5 + $0x578] sm:$0xff]
  %v1110 = vld [vmem:[%s5 + $0x580] sm:$0xff]
  %v1111 = vld [vmem:[%s5 + $0x588] sm:$0xff]
  %v1112 = vld [vmem:[%s5 + $0x590] sm:$0xff]
  %v1113 = vld [vmem:[%s5 + $0x598] sm:$0xff]
  %v1114 = vld [vmem:[%s5 + $0x5a0] sm:$0xff]
  %v1115 = vld [vmem:[%s5 + $0x5a8] sm:$0xff]
  %v1116 = vld [vmem:[%s5 + $0x5b0] sm:$0xff]
  %v1117 = vld [vmem:[%s5 + $0x5b8] sm:$0xff]
  %v1118 = vld [vmem:[%s5 + $0x5c0] sm:$0xff]
  %v1119 = vld [vmem:[%s5 + $0x5c8] sm:$0xff]
  %v1120 = vld [vmem:[%s5 + $0x5d0] sm:$0xff]
  %v1121 = vld [vmem:[%s5 + $0x5d8] sm:$0xff]
  %v1122 = vld [vmem:[%s5 + $0x5e0] sm:$0xff]
  %v1123 = vld [vmem:[%s5 + $0x5e8] sm:$0xff]
  %v1124 = vld [vmem:[%s5 + $0x5f0] sm:$0xff]
  %v1125 = vld [vmem:[%s5 + $0x5f8] sm:$0xff]
  %v1126 = vld [vmem:[%s5 + $0x600] sm:$0xff]
  %v1127 = vld [vmem:[%s5 + $0x608] sm:$0xff]
  %v1128 = vld [vmem:[%s5 + $0x610] sm:$0xff]
  %v1129 = vld [vmem:[%s5 + $0x618] sm:$0xff]
  %v1130 = vld [vmem:[%s5 + $0x620] sm:$0xff]
  %v1131 = vld [vmem:[%s5 + $0x628] sm:$0xff]
  %v1132 = vld [vmem:[%s5 + $0x630] sm:$0xff]
  %v1133 = vld [vmem:[%s5 + $0x638] sm:$0xff]
  %v1134 = vld [vmem:[%s5 + $0x640] sm:$0xff]
  %v1135 = vld [vmem:[%s5 + $0x648] sm:$0xff]
  %v1136 = vld [vmem:[%s5 + $0x650] sm:$0xff]
  %v1137 = vld [vmem:[%s5 + $0x658] sm:$0xff]
  %v1138 = vld [vmem:[%s5 + $0x660] sm:$0xff]
  %v1139 = vld [vmem:[%s5 + $0x668] sm:$0xff]
  %v1140 = vld [vmem:[%s5 + $0x670] sm:$0xff]
  %v1141 = vld [vmem:[%s5 + $0x678] sm:$0xff]
  %v1142 = vld [vmem:[%s5 + $0x680] sm:$0xff]
  %v1143 = vld [vmem:[%s5 + $0x688] sm:$0xff]
  %v1144 = vld [vmem:[%s5 + $0x690] sm:$0xff]
  %v1145 = vld [vmem:[%s5 + $0x698] sm:$0xff]
  %v1146 = vld [vmem:[%s5 + $0x6a0] sm:$0xff]
  %v1147 = vld [vmem:[%s5 + $0x6a8] sm:$0xff]
  %v1148 = vld [vmem:[%s5 + $0x6b0] sm:$0xff]
  %v1149 = vld [vmem:[%s5 + $0x6b8] sm:$0xff]
  %v1150 = vld [vmem:[%s5 + $0x6c0] sm:$0xff]
  %v1151 = vld [vmem:[%s5 + $0x6c8] sm:$0xff]
  %v1152 = vld [vmem:[%s5 + $0x6d0] sm:$0xff]
  %v1153 = vld [vmem:[%s5 + $0x6d8] sm:$0xff]
  %v1154 = vld [vmem:[%s5 + $0x6e0] sm:$0xff]
  %v1155 = vld [vmem:[%s5 + $0x6e8] sm:$0xff]
  %v1156 = vld [vmem:[%s5 + $0x6f0] sm:$0xff]
  %v1157 = vld [vmem:[%s5 + $0x6f8] sm:$0xff]
  %v1158 = vld [vmem:[%s5 + $0x700] sm:$0xff]
  %v1159 = vld [vmem:[%s5 + $0x708] sm:$0xff]
  %v1160 = vld [vmem:[%s5 + $0x710] sm:$0xff]
  %v1161 = vld [vmem:[%s5 + $0x718] sm:$0xff]
  %v1162 = vld [vmem:[%s5 + $0x720] sm:$0xff]
  %v1163 = vld [vmem:[%s5 + $0x728] sm:$0xff]
  %v1164 = vld [vmem:[%s5 + $0x730] sm:$0xff]
  %v1165 = vld [vmem:[%s5 + $0x738] sm:$0xff]
  %v1166 = vld [vmem:[%s5 + $0x740] sm:$0xff]
  %v1167 = vld [vmem:[%s5 + $0x748] sm:$0xff]
  %v1168 = vld [vmem:[%s5 + $0x750] sm:$0xff]
  %v1169 = vld [vmem:[%s5 + $0x758] sm:$0xff]
  %v1170 = vld [vmem:[%s5 + $0x760] sm:$0xff]
  %v1171 = vld [vmem:[%s5 + $0x768] sm:$0xff]
  %v1172 = vld [vmem:[%s5 + $0x770] sm:$0xff]
  %v1173 = vld [vmem:[%s5 + $0x778] sm:$0xff]
  %v1174 = vld [vmem:[%s5 + $0x780] sm:$0xff]
  %v1175 = vld [vmem:[%s5 + $0x788] sm:$0xff]
  %v1176 = vld [vmem:[%s5 + $0x790] sm:$0xff]
  %v1177 = vld [vmem:[%s5 + $0x798] sm:$0xff]
  %v1178 = vld [vmem:[%s5 + $0x7a0] sm:$0xff]
  %v1179 = vld [vmem:[%s5 + $0x7a8] sm:$0xff]
  %v1180 = vld [vmem:[%s5 + $0x7b0] sm:$0xff]
  %v1181 = vld [vmem:[%s5 + $0x7b8] sm:$0xff]
  %v1182 = vld [vmem:[%s5 + $0x7c0] sm:$0xff]
  %v1183 = vld [vmem:[%s5 + $0x7c8] sm:$0xff]
  %v1184 = vld [vmem:[%s5 + $0x7d0] sm:$0xff]
  %v1185 = vld [vmem:[%s5 + $0x7d8] sm:$0xff]
  %v1186 = vld [vmem:[%s5 + $0x7e0] sm:$0xff]
  %v1187 = vld [vmem:[%s5 + $0x7e8] sm:$0xff]
  %v1188 = vld [vmem:[%s5 + $0x7f0] sm:$0xff]
  %v1189 = vld [vmem:[%s5 + $0x7f8] sm:$0xff]
  %v1190 = vld [vmem:[%s6] sm:$0xff]
  %v1191 = vld [vmem:[%s6 + $0x8] sm:$0xff]
  %v1194 = vlaneseq
  %v1195 = vshrl.u32 %v1194, 7
  %v1196 = vsub.s32 0, %v1195
  %v1197 = vrot.slane %v1190, %v1196
  %v1198 = vlaneseq
  %v1199 = vshrl.u32 %v1198, 7
  %v1200 = vsub.s32 1, %v1199
  %v1201 = vrot.slane %v1190, %v1200
  %v1202 = vlaneseq
  %v1203 = vshrl.u32 %v1202, 7
  %v1204 = vsub.s32 2, %v1203
  %v1205 = vrot.slane %v1190, %v1204
  %v1206 = vlaneseq
  %v1207 = vshrl.u32 %v1206, 7
  %v1208 = vsub.s32 3, %v1207
  %v1209 = vrot.slane %v1190, %v1208
  %v1210 = vlaneseq
  %v1211 = vshrl.u32 %v1210, 7
  %v1212 = vsub.s32 4, %v1211
  %v1213 = vrot.slane %v1190, %v1212
  %v1214 = vlaneseq
  %v1215 = vshrl.u32 %v1214, 7
  %v1216 = vsub.s32 5, %v1215
  %v1217 = vrot.slane %v1190, %v1216
  %v1218 = vlaneseq
  %v1219 = vshrl.u32 %v1218, 7
  %v1220 = vsub.s32 6, %v1219
  %v1221 = vrot.slane %v1190, %v1220
  %v1222 = vlaneseq
  %v1223 = vshrl.u32 %v1222, 7
  %v1224 = vsub.s32 7, %v1223
  %v1225 = vrot.slane %v1190, %v1224
  %v1226 = vlaneseq
  %v1227 = vshrl.u32 %v1226, 7
  %v1228 = vsub.s32 0, %v1227
  %v1229 = vrot.slane %v1191, %v1228
  %v1230 = vlaneseq
  %v1231 = vshrl.u32 %v1230, 7
  %v1232 = vsub.s32 1, %v1231
  %v1233 = vrot.slane %v1191, %v1232
  %v1234 = vlaneseq
  %v1235 = vshrl.u32 %v1234, 7
  %v1236 = vsub.s32 2, %v1235
  %v1237 = vrot.slane %v1191, %v1236
  %v1238 = vlaneseq
  %v1239 = vshrl.u32 %v1238, 7
  %v1240 = vsub.s32 3, %v1239
  %v1241 = vrot.slane %v1191, %v1240
  %v1242 = vlaneseq
  %v1243 = vshrl.u32 %v1242, 7
  %v1244 = vsub.s32 4, %v1243
  %v1245 = vrot.slane %v1191, %v1244
  %v1246 = vlaneseq
  %v1247 = vshrl.u32 %v1246, 7
  %v1248 = vsub.s32 5, %v1247
  %v1249 = vrot.slane %v1191, %v1248
  %v1250 = vlaneseq
  %v1251 = vshrl.u32 %v1250, 7
  %v1252 = vsub.s32 6, %v1251
  %v1253 = vrot.slane %v1191, %v1252
  %v1254 = vlaneseq
  %v1255 = vshrl.u32 %v1254, 7
  %v1256 = vsub.s32 7, %v1255
  %v1257 = vrot.slane %v1191, %v1256
  %1274 = vmatprep.subr.mxu0 %v935
  %1275 = vmatpush1.msra.mxu0 %v934
  %1276 = vmatprep.subr.mxu0 %v951
  %1277 = vmatpush1.msra.mxu0 %v950
  %1278 = vmatprep.subr.mxu0 %v967
  %1279 = vmatpush1.msra.mxu0 %v966
  %1280 = vmatprep.subr.mxu0 %v983
  %1281 = vmatpush1.msra.mxu0 %v982
  %1282 = vmatprep.subr.mxu0 %v999
  %1283 = vmatpush1.msra.mxu0 %v998
  %1284 = vmatprep.subr.mxu0 %v1015
  %1285 = vmatpush1.msra.mxu0 %v1014
  %1286 = vmatprep.subr.mxu0 %v1031
  %1287 = vmatpush1.msra.mxu0 %v1030
  %1288 = vmatprep.subr.mxu0 %v1047
  %1289 = vmatpush1.msra.mxu0 %v1046
  %1290 = vmatprep.subr.mxu0 %v1063
  %1291 = vmatpush1.msra.mxu0 %v1062
  %1292 = vmatprep.subr.mxu0 %v1079
  %1293 = vmatpush1.msra.mxu0 %v1078
  %1294 = vmatprep.subr.mxu0 %v1095
  %1295 = vmatpush1.msra.mxu0 %v1094
  %1296 = vmatprep.subr.mxu0 %v1111
  %1297 = vmatpush1.msra.mxu0 %v1110
  %1298 = vmatprep.subr.mxu0 %v1127
  %1299 = vmatpush1.msra.mxu0 %v1126
  %1300 = vmatprep.subr.mxu0 %v1143
  %1301 = vmatpush1.msra.mxu0 %v1142
  %1302 = vmatprep.subr.mxu0 %v1159
  %1303 = vmatpush1.msra.mxu0 %v1158
  %1304 = vmatprep.subr.mxu0 %v1175
  %1305 = vmatpush1.msra.mxu0 %v1174
  %1306 = vmatprep.subr.mxu0 0.0
  %1307 = vmatpush1.msra.mxu0 0.0
  %1308 = vmatprep.subr.mxu0 0.0
  %1309 = vmatpush1.msra.mxu0 0.0
  %1310 = vmatprep.subr.mxu0 0.0
  %1311 = vmatpush1.msra.mxu0 0.0
  %1312 = vmatprep.subr.mxu0 0.0
  %1313 = vmatpush1.msra.mxu0 0.0
  %1314 = vmatprep.subr.mxu0 0.0
  %1315 = vmatpush1.msra.mxu0 0.0
  %1316 = vmatprep.subr.mxu0 0.0
  %1317 = vmatpush1.msra.mxu0 0.0
  %1318 = vmatprep.subr.mxu0 0.0
  %1319 = vmatpush1.msra.mxu0 0.0
  %1320 = vmatprep.subr.mxu0 0.0
  %1321 = vmatpush1.msra.mxu0 0.0
  %1322 = vmatprep.subr.mxu0 0.0
  %1323 = vmatpush1.msra.mxu0 0.0
  %1324 = vmatprep.subr.mxu0 0.0
  %1325 = vmatpush1.msra.mxu0 0.0
  %1326 = vmatprep.subr.mxu0 0.0
  %1327 = vmatpush1.msra.mxu0 0.0
  %1328 = vmatprep.subr.mxu0 0.0
  %1329 = vmatpush1.msra.mxu0 0.0
  %1330 = vmatprep.subr.mxu0 0.0
  %1331 = vmatpush1.msra.mxu0 0.0
  %1332 = vmatprep.subr.mxu0 0.0
  %1333 = vmatpush1.msra.mxu0 0.0
  %1334 = vmatprep.subr.mxu0 0.0
  %1335 = vmatpush1.msra.mxu0 0.0
  %1336 = vmatprep.subr.mxu0 0.0
  %1337 = vmatpush1.msra.mxu0 0.0
  %1338 = vmatprep.mubr.f32.mxu0 0.0
  %1339 = vmatmul.mubr.f32.gmra.mrb[0].mxu0 %v933
  %v1340 = vpop.f32.mrb[0].mxu0
  %v1341 = vadd.f32 %v1197, %v1340
  %v1342 = vpop.f32.mrb[0].mxu0
  %v1343 = vadd.f32 %v1201, %v1342
  %1344 = vdwg.mxu0
  %1345 = vmatprep.subr.mxu0 %v937
  %1346 = vmatpush1.msra.mxu0 %v936
  %1347 = vmatprep.subr.mxu0 %v953
  %1348 = vmatpush1.msra.mxu0 %v952
  %1349 = vmatprep.subr.mxu0 %v969
  %1350 = vmatpush1.msra.mxu0 %v968
  %1351 = vmatprep.subr.mxu0 %v985
  %1352 = vmatpush1.msra.mxu0 %v984
  %1353 = vmatprep.subr.mxu0 %v1001
  %1354 = vmatpush1.msra.mxu0 %v1000
  %1355 = vmatprep.subr.mxu0 %v1017
  %1356 = vmatpush1.msra.mxu0 %v1016
  %1357 = vmatprep.subr.mxu0 %v1033
  %1358 = vmatpush1.msra.mxu0 %v1032
  %1359 = vmatprep.subr.mxu0 %v1049
  %1360 = vmatpush1.msra.mxu0 %v1048
  %1361 = vmatprep.subr.mxu0 %v1065
  %1362 = vmatpush1.msra.mxu0 %v1064
  %1363 = vmatprep.subr.mxu0 %v1081
  %1364 = vmatpush1.msra.mxu0 %v1080
  %1365 = vmatprep.subr.mxu0 %v1097
  %1366 = vmatpush1.msra.mxu0 %v1096
  %1367 = vmatprep.subr.mxu0 %v1113
  %1368 = vmatpush1.msra.mxu0 %v1112
  %1369 = vmatprep.subr.mxu0 %v1129
  %1370 = vmatpush1.msra.mxu0 %v1128
  %1371 = vmatprep.subr.mxu0 %v1145
  %1372 = vmatpush1.msra.mxu0 %v1144
  %1373 = vmatprep.subr.mxu0 %v1161
  %1374 = vmatpush1.msra.mxu0 %v1160
  %1375 = vmatprep.subr.mxu0 %v1177
  %1376 = vmatpush1.msra.mxu0 %v1176
  %1377 = vmatprep.subr.mxu0 0.0
  %1378 = vmatpush1.msra.mxu0 0.0
  %1379 = vmatprep.subr.mxu0 0.0
  %1380 = vmatpush1.msra.mxu0 0.0
  %1381 = vmatprep.subr.mxu0 0.0
  %1382 = vmatpush1.msra.mxu0 0.0
  %1383 = vmatprep.subr.mxu0 0.0
  %1384 = vmatpush1.msra.mxu0 0.0
  %1385 = vmatprep.subr.mxu0 0.0
  %1386 = vmatpush1.msra.mxu0 0.0
  %1387 = vmatprep.subr.mxu0 0.0
  %1388 = vmatpush1.msra.mxu0 0.0
  %1389 = vmatprep.subr.mxu0 0.0
  %1390 = vmatpush1.msra.mxu0 0.0
  %1391 = vmatprep.subr.mxu0 0.0
  %1392 = vmatpush1.msra.mxu0 0.0
  %1393 = vmatprep.subr.mxu0 0.0
  %1394 = vmatpush1.msra.mxu0 0.0
  %1395 = vmatprep.subr.mxu0 0.0
  %1396 = vmatpush1.msra.mxu0 0.0
  %1397 = vmatprep.subr.mxu0 0.0
  %1398 = vmatpush1.msra.mxu0 0.0
  %1399 = vmatprep.subr.mxu0 0.0
  %1400 = vmatpush1.msra.mxu0 0.0
  %1401 = vmatprep.subr.mxu0 0.0
  %1402 = vmatpush1.msra.mxu0 0.0
  %1403 = vmatprep.subr.mxu0 0.0
  %1404 = vmatpush1.msra.mxu0 0.0
  %1405 = vmatprep.subr.mxu0 0.0
  %1406 = vmatpush1.msra.mxu0 0.0
  %1407 = vmatprep.subr.mxu0 0.0
  %1408 = vmatpush1.msra.mxu0 0.0
  %1409 = vmatprep.mubr.f32.mxu0 0.0
  %1410 = vmatmul.mubr.f32.gmra.mrb[0].mxu0 %v933
  %v1411 = vpop.f32.mrb[0].mxu0
  %v1412 = vadd.f32 %v1205, %v1411
  %v1413 = vpop.f32.mrb[0].mxu0
  %v1414 = vadd.f32 %v1209, %v1413
  %1415 = vdwg.mxu0
  %1416 = vmatprep.subr.mxu0 %v939
  %1417 = vmatpush1.msra.mxu0 %v938
  %1418 = vmatprep.subr.mxu0 %v955
  %1419 = vmatpush1.msra.mxu0 %v954
  %1420 = vmatprep.subr.mxu0 %v971
  %1421 = vmatpush1.msra.mxu0 %v970
  %1422 = vmatprep.subr.mxu0 %v987
  %1423 = vmatpush1.msra.mxu0 %v986
  %1424 = vmatprep.subr.mxu0 %v1003
  %1425 = vmatpush1.msra.mxu0 %v1002
  %1426 = vmatprep.subr.mxu0 %v1019
  %1427 = vmatpush1.msra.mxu0 %v1018
  %1428 = vmatprep.subr.mxu0 %v1035
  %1429 = vmatpush1.msra.mxu0 %v1034
  %1430 = vmatprep.subr.mxu0 %v1051
  %1431 = vmatpush1.msra.mxu0 %v1050
  %1432 = vmatprep.subr.mxu0 %v1067
  %1433 = vmatpush1.msra.mxu0 %v1066
  %1434 = vmatprep.subr.mxu0 %v1083
  %1435 = vmatpush1.msra.mxu0 %v1082
  %1436 = vmatprep.subr.mxu0 %v1099
  %1437 = vmatpush1.msra.mxu0 %v1098
  %1438 = vmatprep.subr.mxu0 %v1115
  %1439 = vmatpush1.msra.mxu0 %v1114
  %1440 = vmatprep.subr.mxu0 %v1131
  %1441 = vmatpush1.msra.mxu0 %v1130
  %1442 = vmatprep.subr.mxu0 %v1147
  %1443 = vmatpush1.msra.mxu0 %v1146
  %1444 = vmatprep.subr.mxu0 %v1163
  %1445 = vmatpush1.msra.mxu0 %v1162
  %1446 = vmatprep.subr.mxu0 %v1179
  %1447 = vmatpush1.msra.mxu0 %v1178
  %1448 = vmatprep.subr.mxu0 0.0
  %1449 = vmatpush1.msra.mxu0 0.0
  %1450 = vmatprep.subr.mxu0 0.0
  %1451 = vmatpush1.msra.mxu0 0.0
  %1452 = vmatprep.subr.mxu0 0.0
  %1453 = vmatpush1.msra.mxu0 0.0
  %1454 = vmatprep.subr.mxu0 0.0
  %1455 = vmatpush1.msra.mxu0 0.0
  %1456 = vmatprep.subr.mxu0 0.0
  %1457 = vmatpush1.msra.mxu0 0.0
  %1458 = vmatprep.subr.mxu0 0.0
  %1459 = vmatpush1.msra.mxu0 0.0
  %1460 = vmatprep.subr.mxu0 0.0
  %1461 = vmatpush1.msra.mxu0 0.0
  %1462 = vmatprep.subr.mxu0 0.0
  %1463 = vmatpush1.msra.mxu0 0.0
  %1464 = vmatprep.subr.mxu0 0.0
  %1465 = vmatpush1.msra.mxu0 0.0
  %1466 = vmatprep.subr.mxu0 0.0
  %1467 = vmatpush1.msra.mxu0 0.0
  %1468 = vmatprep.subr.mxu0 0.0
  %1469 = vmatpush1.msra.mxu0 0.0
  %1470 = vmatprep.subr.mxu0 0.0
  %1471 = vmatpush1.msra.mxu0 0.0
  %1472 = vmatprep.subr.mxu0 0.0
  %1473 = vmatpush1.msra.mxu0 0.0
  %1474 = vmatprep.subr.mxu0 0.0
  %1475 = vmatpush1.msra.mxu0 0.0
  %1476 = vmatprep.subr.mxu0 0.0
  %1477 = vmatpush1.msra.mxu0 0.0
  %1478 = vmatprep.subr.mxu0 0.0
  %1479 = vmatpush1.msra.mxu0 0.0
  %1480 = vmatprep.mubr.f32.mxu0 0.0
  %1481 = vmatmul.mubr.f32.gmra.mrb[0].mxu0 %v933
  %v1482 = vpop.f32.mrb[0].mxu0
  %v1483 = vadd.f32 %v1213, %v1482
  %v1484 = vpop.f32.mrb[0].mxu0
  %v1485 = vadd.f32 %v1217, %v1484
  %1486 = vdwg.mxu0
  %1487 = vmatprep.subr.mxu0 %v941
  %1488 = vmatpush1.msra.mxu0 %v940
  %1489 = vmatprep.subr.mxu0 %v957
  %1490 = vmatpush1.msra.mxu0 %v956
  %1491 = vmatprep.subr.mxu0 %v973
  %1492 = vmatpush1.msra.mxu0 %v972
  %1493 = vmatprep.subr.mxu0 %v989
  %1494 = vmatpush1.msra.mxu0 %v988
  %1495 = vmatprep.subr.mxu0 %v1005
  %1496 = vmatpush1.msra.mxu0 %v1004
  %1497 = vmatprep.subr.mxu0 %v1021
  %1498 = vmatpush1.msra.mxu0 %v1020
  %1499 = vmatprep.subr.mxu0 %v1037
  %1500 = vmatpush1.msra.mxu0 %v1036
  %1501 = vmatprep.subr.mxu0 %v1053
  %1502 = vmatpush1.msra.mxu0 %v1052
  %1503 = vmatprep.subr.mxu0 %v1069
  %1504 = vmatpush1.msra.mxu0 %v1068
  %1505 = vmatprep.subr.mxu0 %v1085
  %1506 = vmatpush1.msra.mxu0 %v1084
  %1507 = vmatprep.subr.mxu0 %v1101
  %1508 = vmatpush1.msra.mxu0 %v1100
  %1509 = vmatprep.subr.mxu0 %v1117
  %1510 = vmatpush1.msra.mxu0 %v1116
  %1511 = vmatprep.subr.mxu0 %v1133
  %1512 = vmatpush1.msra.mxu0 %v1132
  %1513 = vmatprep.subr.mxu0 %v1149
  %1514 = vmatpush1.msra.mxu0 %v1148
  %1515 = vmatprep.subr.mxu0 %v1165
  %1516 = vmatpush1.msra.mxu0 %v1164
  %1517 = vmatprep.subr.mxu0 %v1181
  %1518 = vmatpush1.msra.mxu0 %v1180
  %1519 = vmatprep.subr.mxu0 0.0
  %1520 = vmatpush1.msra.mxu0 0.0
  %1521 = vmatprep.subr.mxu0 0.0
  %1522 = vmatpush1.msra.mxu0 0.0
  %1523 = vmatprep.subr.mxu0 0.0
  %1524 = vmatpush1.msra.mxu0 0.0
  %1525 = vmatprep.subr.mxu0 0.0
  %1526 = vmatpush1.msra.mxu0 0.0
  %1527 = vmatprep.subr.mxu0 0.0
  %1528 = vmatpush1.msra.mxu0 0.0
  %1529 = vmatprep.subr.mxu0 0.0
  %1530 = vmatpush1.msra.mxu0 0.0
  %1531 = vmatprep.subr.mxu0 0.0
  %1532 = vmatpush1.msra.mxu0 0.0
  %1533 = vmatprep.subr.mxu0 0.0
  %1534 = vmatpush1.msra.mxu0 0.0
  %1535 = vmatprep.subr.mxu0 0.0
  %1536 = vmatpush1.msra.mxu0 0.0
  %1537 = vmatprep.subr.mxu0 0.0
  %1538 = vmatpush1.msra.mxu0 0.0
  %1539 = vmatprep.subr.mxu0 0.0
  %1540 = vmatpush1.msra.mxu0 0.0
  %1541 = vmatprep.subr.mxu0 0.0
  %1542 = vmatpush1.msra.mxu0 0.0
  %1543 = vmatprep.subr.mxu0 0.0
  %1544 = vmatpush1.msra.mxu0 0.0
  %1545 = vmatprep.subr.mxu0 0.0
  %1546 = vmatpush1.msra.mxu0 0.0
  %1547 = vmatprep.subr.mxu0 0.0
  %1548 = vmatpush1.msra.mxu0 0.0
  %1549 = vmatprep.subr.mxu0 0.0
  %1550 = vmatpush1.msra.mxu0 0.0
  %1551 = vmatprep.mubr.f32.mxu0 0.0
  %1552 = vmatmul.mubr.f32.gmra.mrb[0].mxu0 %v933
  %v1553 = vpop.f32.mrb[0].mxu0
  %v1554 = vadd.f32 %v1221, %v1553
  %v1555 = vpop.f32.mrb[0].mxu0
  %v1556 = vadd.f32 %v1225, %v1555
  %1557 = vdwg.mxu0
  %1558 = vmatprep.subr.mxu0 %v943
  %1559 = vmatpush1.msra.mxu0 %v942
  %1560 = vmatprep.subr.mxu0 %v959
  %1561 = vmatpush1.msra.mxu0 %v958
  %1562 = vmatprep.subr.mxu0 %v975
  %1563 = vmatpush1.msra.mxu0 %v974
  %1564 = vmatprep.subr.mxu0 %v991
  %1565 = vmatpush1.msra.mxu0 %v990
  %1566 = vmatprep.subr.mxu0 %v1007
  %1567 = vmatpush1.msra.mxu0 %v1006
  %1568 = vmatprep.subr.mxu0 %v1023
  %1569 = vmatpush1.msra.mxu0 %v1022
  %1570 = vmatprep.subr.mxu0 %v1039
  %1571 = vmatpush1.msra.mxu0 %v1038
  %1572 = vmatprep.subr.mxu0 %v1055
  %1573 = vmatpush1.msra.mxu0 %v1054
  %1574 = vmatprep.subr.mxu0 %v1071
  %1575 = vmatpush1.msra.mxu0 %v1070
  %1576 = vmatprep.subr.mxu0 %v1087
  %1577 = vmatpush1.msra.mxu0 %v1086
  %1578 = vmatprep.subr.mxu0 %v1103
  %1579 = vmatpush1.msra.mxu0 %v1102
  %1580 = vmatprep.subr.mxu0 %v1119
  %1581 = vmatpush1.msra.mxu0 %v1118
  %1582 = vmatprep.subr.mxu0 %v1135
  %1583 = vmatpush1.msra.mxu0 %v1134
  %1584 = vmatprep.subr.mxu0 %v1151
  %1585 = vmatpush1.msra.mxu0 %v1150
  %1586 = vmatprep.subr.mxu0 %v1167
  %1587 = vmatpush1.msra.mxu0 %v1166
  %1588 = vmatprep.subr.mxu0 %v1183
  %1589 = vmatpush1.msra.mxu0 %v1182
  %1590 = vmatprep.subr.mxu0 0.0
  %1591 = vmatpush1.msra.mxu0 0.0
  %1592 = vmatprep.subr.mxu0 0.0
  %1593 = vmatpush1.msra.mxu0 0.0
  %1594 = vmatprep.subr.mxu0 0.0
  %1595 = vmatpush1.msra.mxu0 0.0
  %1596 = vmatprep.subr.mxu0 0.0
  %1597 = vmatpush1.msra.mxu0 0.0
  %1598 = vmatprep.subr.mxu0 0.0
  %1599 = vmatpush1.msra.mxu0 0.0
  %1600 = vmatprep.subr.mxu0 0.0
  %1601 = vmatpush1.msra.mxu0 0.0
  %1602 = vmatprep.subr.mxu0 0.0
  %1603 = vmatpush1.msra.mxu0 0.0
  %1604 = vmatprep.subr.mxu0 0.0
  %1605 = vmatpush1.msra.mxu0 0.0
  %1606 = vmatprep.subr.mxu0 0.0
  %1607 = vmatpush1.msra.mxu0 0.0
  %1608 = vmatprep.subr.mxu0 0.0
  %1609 = vmatpush1.msra.mxu0 0.0
  %1610 = vmatprep.subr.mxu0 0.0
  %1611 = vmatpush1.msra.mxu0 0.0
  %1612 = vmatprep.subr.mxu0 0.0
  %1613 = vmatpush1.msra.mxu0 0.0
  %1614 = vmatprep.subr.mxu0 0.0
  %1615 = vmatpush1.msra.mxu0 0.0
  %1616 = vmatprep.subr.mxu0 0.0
  %1617 = vmatpush1.msra.mxu0 0.0
  %1618 = vmatprep.subr.mxu0 0.0
  %1619 = vmatpush1.msra.mxu0 0.0
  %1620 = vmatprep.subr.mxu0 0.0
  %1621 = vmatpush1.msra.mxu0 0.0
  %1622 = vmatprep.mubr.f32.mxu0 0.0
  %1623 = vmatmul.mubr.f32.gmra.mrb[0].mxu0 %v933
  %v1624 = vpop.f32.mrb[0].mxu0
  %v1625 = vadd.f32 %v1229, %v1624
  %v1626 = vpop.f32.mrb[0].mxu0
  %v1627 = vadd.f32 %v1233, %v1626
  %1628 = vdwg.mxu0
  %1629 = vmatprep.subr.mxu0 %v945
  %1630 = vmatpush1.msra.mxu0 %v944
  %1631 = vmatprep.subr.mxu0 %v961
  %1632 = vmatpush1.msra.mxu0 %v960
  %1633 = vmatprep.subr.mxu0 %v977
  %1634 = vmatpush1.msra.mxu0 %v976
  %1635 = vmatprep.subr.mxu0 %v993
  %1636 = vmatpush1.msra.mxu0 %v992
  %1637 = vmatprep.subr.mxu0 %v1009
  %1638 = vmatpush1.msra.mxu0 %v1008
  %1639 = vmatprep.subr.mxu0 %v1025
  %1640 = vmatpush1.msra.mxu0 %v1024
  %1641 = vmatprep.subr.mxu0 %v1041
  %1642 = vmatpush1.msra.mxu0 %v1040
  %1643 = vmatprep.subr.mxu0 %v1057
  %1644 = vmatpush1.msra.mxu0 %v1056
  %1645 = vmatprep.subr.mxu0 %v1073
  %1646 = vmatpush1.msra.mxu0 %v1072
  %1647 = vmatprep.subr.mxu0 %v1089
  %1648 = vmatpush1.msra.mxu0 %v1088
  %1649 = vmatprep.subr.mxu0 %v1105
  %1650 = vmatpush1.msra.mxu0 %v1104
  %1651 = vmatprep.subr.mxu0 %v1121
  %1652 = vmatpush1.msra.mxu0 %v1120
  %1653 = vmatprep.subr.mxu0 %v1137
  %1654 = vmatpush1.msra.mxu0 %v1136
  %1655 = vmatprep.subr.mxu0 %v1153
  %1656 = vmatpush1.msra.mxu0 %v1152
  %1657 = vmatprep.subr.mxu0 %v1169
  %1658 = vmatpush1.msra.mxu0 %v1168
  %1659 = vmatprep.subr.mxu0 %v1185
  %1660 = vmatpush1.msra.mxu0 %v1184
  %1661 = vmatprep.subr.mxu0 0.0
  %1662 = vmatpush1.msra.mxu0 0.0
  %1663 = vmatprep.subr.mxu0 0.0
  %1664 = vmatpush1.msra.mxu0 0.0
  %1665 = vmatprep.subr.mxu0 0.0
  %1666 = vmatpush1.msra.mxu0 0.0
  %1667 = vmatprep.subr.mxu0 0.0
  %1668 = vmatpush1.msra.mxu0 0.0
  %1669 = vmatprep.subr.mxu0 0.0
  %1670 = vmatpush1.msra.mxu0 0.0
  %1671 = vmatprep.subr.mxu0 0.0
  %1672 = vmatpush1.msra.mxu0 0.0
  %1673 = vmatprep.subr.mxu0 0.0
  %1674 = vmatpush1.msra.mxu0 0.0
  %1675 = vmatprep.subr.mxu0 0.0
  %1676 = vmatpush1.msra.mxu0 0.0
  %1677 = vmatprep.subr.mxu0 0.0
  %1678 = vmatpush1.msra.mxu0 0.0
  %1679 = vmatprep.subr.mxu0 0.0
  %1680 = vmatpush1.msra.mxu0 0.0
  %1681 = vmatprep.subr.mxu0 0.0
  %1682 = vmatpush1.msra.mxu0 0.0
  %1683 = vmatprep.subr.mxu0 0.0
  %1684 = vmatpush1.msra.mxu0 0.0
  %1685 = vmatprep.subr.mxu0 0.0
  %1686 = vmatpush1.msra.mxu0 0.0
  %1687 = vmatprep.subr.mxu0 0.0
  %1688 = vmatpush1.msra.mxu0 0.0
  %1689 = vmatprep.subr.mxu0 0.0
  %1690 = vmatpush1.msra.mxu0 0.0
  %1691 = vmatprep.subr.mxu0 0.0
  %1692 = vmatpush1.msra.mxu0 0.0
  %1693 = vmatprep.mubr.f32.mxu0 0.0
  %1694 = vmatmul.mubr.f32.gmra.mrb[0].mxu0 %v933
  %v1695 = vpop.f32.mrb[0].mxu0
  %v1696 = vadd.f32 %v1237, %v1695
  %v1697 = vpop.f32.mrb[0].mxu0
  %v1698 = vadd.f32 %v1241, %v1697
  %1699 = vdwg.mxu0
  %1700 = vmatprep.subr.mxu0 %v947
  %1701 = vmatpush1.msra.mxu0 %v946
  %1702 = vmatprep.subr.mxu0 %v963
  %1703 = vmatpush1.msra.mxu0 %v962
  %1704 = vmatprep.subr.mxu0 %v979
  %1705 = vmatpush1.msra.mxu0 %v978
  %1706 = vmatprep.subr.mxu0 %v995
  %1707 = vmatpush1.msra.mxu0 %v994
  %1708 = vmatprep.subr.mxu0 %v1011
  %1709 = vmatpush1.msra.mxu0 %v1010
  %1710 = vmatprep.subr.mxu0 %v1027
  %1711 = vmatpush1.msra.mxu0 %v1026
  %1712 = vmatprep.subr.mxu0 %v1043
  %1713 = vmatpush1.msra.mxu0 %v1042
  %1714 = vmatprep.subr.mxu0 %v1059
  %1715 = vmatpush1.msra.mxu0 %v1058
  %1716 = vmatprep.subr.mxu0 %v1075
  %1717 = vmatpush1.msra.mxu0 %v1074
  %1718 = vmatprep.subr.mxu0 %v1091
  %1719 = vmatpush1.msra.mxu0 %v1090
  %1720 = vmatprep.subr.mxu0 %v1107
  %1721 = vmatpush1.msra.mxu0 %v1106
  %1722 = vmatprep.subr.mxu0 %v1123
  %1723 = vmatpush1.msra.mxu0 %v1122
  %1724 = vmatprep.subr.mxu0 %v1139
  %1725 = vmatpush1.msra.mxu0 %v1138
  %1726 = vmatprep.subr.mxu0 %v1155
  %1727 = vmatpush1.msra.mxu0 %v1154
  %1728 = vmatprep.subr.mxu0 %v1171
  %1729 = vmatpush1.msra.mxu0 %v1170
  %1730 = vmatprep.subr.mxu0 %v1187
  %1731 = vmatpush1.msra.mxu0 %v1186
  %1732 = vmatprep.subr.mxu0 0.0
  %1733 = vmatpush1.msra.mxu0 0.0
  %1734 = vmatprep.subr.mxu0 0.0
  %1735 = vmatpush1.msra.mxu0 0.0
  %1736 = vmatprep.subr.mxu0 0.0
  %1737 = vmatpush1.msra.mxu0 0.0
  %1738 = vmatprep.subr.mxu0 0.0
  %1739 = vmatpush1.msra.mxu0 0.0
  %1740 = vmatprep.subr.mxu0 0.0
  %1741 = vmatpush1.msra.mxu0 0.0
  %1742 = vmatprep.subr.mxu0 0.0
  %1743 = vmatpush1.msra.mxu0 0.0
  %1744 = vmatprep.subr.mxu0 0.0
  %1745 = vmatpush1.msra.mxu0 0.0
  %1746 = vmatprep.subr.mxu0 0.0
  %1747 = vmatpush1.msra.mxu0 0.0
  %1748 = vmatprep.subr.mxu0 0.0
  %1749 = vmatpush1.msra.mxu0 0.0
  %1750 = vmatprep.subr.mxu0 0.0
  %1751 = vmatpush1.msra.mxu0 0.0
  %1752 = vmatprep.subr.mxu0 0.0
  %1753 = vmatpush1.msra.mxu0 0.0
  %1754 = vmatprep.subr.mxu0 0.0
  %1755 = vmatpush1.msra.mxu0 0.0
  %1756 = vmatprep.subr.mxu0 0.0
  %1757 = vmatpush1.msra.mxu0 0.0
  %1758 = vmatprep.subr.mxu0 0.0
  %1759 = vmatpush1.msra.mxu0 0.0
  %1760 = vmatprep.subr.mxu0 0.0
  %1761 = vmatpush1.msra.mxu0 0.0
  %1762 = vmatprep.subr.mxu0 0.0
  %1763 = vmatpush1.msra.mxu0 0.0
  %1764 = vmatprep.mubr.f32.mxu0 0.0
  %1765 = vmatmul.mubr.f32.gmra.mrb[0].mxu0 %v933
  %v1766 = vpop.f32.mrb[0].mxu0
  %v1767 = vadd.f32 %v1245, %v1766
  %v1768 = vpop.f32.mrb[0].mxu0
  %v1769 = vadd.f32 %v1249, %v1768
  %1770 = vdwg.mxu0
  %1771 = vmatprep.subr.mxu0 %v949
  %1772 = vmatpush1.msra.mxu0 %v948
  %1773 = vmatprep.subr.mxu0 %v965
  %1774 = vmatpush1.msra.mxu0 %v964
  %1775 = vmatprep.subr.mxu0 %v981
  %1776 = vmatpush1.msra.mxu0 %v980
  %1777 = vmatprep.subr.mxu0 %v997
  %1778 = vmatpush1.msra.mxu0 %v996
  %1779 = vmatprep.subr.mxu0 %v1013
  %1780 = vmatpush1.msra.mxu0 %v1012
  %1781 = vmatprep.subr.mxu0 %v1029
  %1782 = vmatpush1.msra.mxu0 %v1028
  %1783 = vmatprep.subr.mxu0 %v1045
  %1784 = vmatpush1.msra.mxu0 %v1044
  %1785 = vmatprep.subr.mxu0 %v1061
  %1786 = vmatpush1.msra.mxu0 %v1060
  %1787 = vmatprep.subr.mxu0 %v1077
  %1788 = vmatpush1.msra.mxu0 %v1076
  %1789 = vmatprep.subr.mxu0 %v1093
  %1790 = vmatpush1.msra.mxu0 %v1092
  %1791 = vmatprep.subr.mxu0 %v1109
  %1792 = vmatpush1.msra.mxu0 %v1108
  %1793 = vmatprep.subr.mxu0 %v1125
  %1794 = vmatpush1.msra.mxu0 %v1124
  %1795 = vmatprep.subr.mxu0 %v1141
  %1796 = vmatpush1.msra.mxu0 %v1140
  %1797 = vmatprep.subr.mxu0 %v1157
  %1798 = vmatpush1.msra.mxu0 %v1156
  %1799 = vmatprep.subr.mxu0 %v1173
  %1800 = vmatpush1.msra.mxu0 %v1172
  %1801 = vmatprep.subr.mxu0 %v1189
  %1802 = vmatpush1.msra.mxu0 %v1188
  %1803 = vmatprep.subr.mxu0 0.0
  %1804 = vmatpush1.msra.mxu0 0.0
  %1805 = vmatprep.subr.mxu0 0.0
  %1806 = vmatpush1.msra.mxu0 0.0
  %1807 = vmatprep.subr.mxu0 0.0
  %1808 = vmatpush1.msra.mxu0 0.0
  %1809 = vmatprep.subr.mxu0 0.0
  %1810 = vmatpush1.msra.mxu0 0.0
  %1811 = vmatprep.subr.mxu0 0.0
  %1812 = vmatpush1.msra.mxu0 0.0
  %1813 = vmatprep.subr.mxu0 0.0
  %1814 = vmatpush1.msra.mxu0 0.0
  %1815 = vmatprep.subr.mxu0 0.0
  %1816 = vmatpush1.msra.mxu0 0.0
  %1817 = vmatprep.subr.mxu0 0.0
  %1818 = vmatpush1.msra.mxu0 0.0
  %1819 = vmatprep.subr.mxu0 0.0
  %1820 = vmatpush1.msra.mxu0 0.0
  %1821 = vmatprep.subr.mxu0 0.0
  %1822 = vmatpush1.msra.mxu0 0.0
  %1823 = vmatprep.subr.mxu0 0.0
  %1824 = vmatpush1.msra.mxu0 0.0
  %1825 = vmatprep.subr.mxu0 0.0
  %1826 = vmatpush1.msra.mxu0 0.0
  %1827 = vmatprep.subr.mxu0 0.0
  %1828 = vmatpush1.msra.mxu0 0.0
  %1829 = vmatprep.subr.mxu0 0.0
  %1830 = vmatpush1.msra.mxu0 0.0
  %1831 = vmatprep.subr.mxu0 0.0
  %1832 = vmatpush1.msra.mxu0 0.0
  %1833 = vmatprep.subr.mxu0 0.0
  %1834 = vmatpush1.msra.mxu0 0.0
  %1835 = vmatprep.mubr.f32.mxu0 0.0
  %1836 = vmatmul.mubr.f32.gmra.mrb[0].mxu0 %v933
  %v1837 = vpop.f32.mrb[0].mxu0
  %v1838 = vadd.f32 %v1253, %v1837
  %v1839 = vpop.f32.mrb[0].mxu0
  %v1840 = vadd.f32 %v1257, %v1839
  %1841 = vdwg.mxu0
  %v1842 = vmax.f32 %v1341, 0.0
  %v1843 = vmax.f32 %v1343, 0.0
  %v1844 = vmax.f32 %v1412, 0.0
  %v1845 = vmax.f32 %v1414, 0.0
  %v1846 = vmax.f32 %v1483, 0.0
  %v1847 = vmax.f32 %v1485, 0.0
  %v1848 = vmax.f32 %v1554, 0.0
  %v1849 = vmax.f32 %v1556, 0.0
  %v1850 = vmax.f32 %v1625, 0.0
  %v1851 = vmax.f32 %v1627, 0.0
  %v1852 = vmax.f32 %v1696, 0.0
  %v1853 = vmax.f32 %v1698, 0.0
  %v1854 = vmax.f32 %v1767, 0.0
  %v1855 = vmax.f32 %v1769, 0.0
  %v1856 = vmax.f32 %v1838, 0.0
  %v1857 = vmax.f32 %v1840, 0.0
  %v1858 = vld [vmem:[%s7] sm:$0xff]
  %v1859 = vld [vmem:[%s7 + $0x8] sm:$0xff]
  %v1860 = vld [vmem:[%s7 + $0x10] sm:$0xff]
  %v1861 = vld [vmem:[%s7 + $0x18] sm:$0xff]
  %v1862 = vld [vmem:[%s7 + $0x20] sm:$0xff]
  %v1863 = vld [vmem:[%s7 + $0x28] sm:$0xff]
  %v1864 = vld [vmem:[%s7 + $0x30] sm:$0xff]
  %v1865 = vld [vmem:[%s7 + $0x38] sm:$0xff]
  %v1866 = vld [vmem:[%s7 + $0x40] sm:$0xff]
  %v1867 = vld [vmem:[%s7 + $0x48] sm:$0xff]
  %v1868 = vld [vmem:[%s7 + $0x50] sm:$0xff]
  %v1869 = vld [vmem:[%s7 + $0x58] sm:$0xff]
  %v1870 = vld [vmem:[%s7 + $0x60] sm:$0xff]
  %v1871 = vld [vmem:[%s7 + $0x68] sm:$0xff]
  %v1872 = vld [vmem:[%s7 + $0x70] sm:$0xff]
  %v1873 = vld [vmem:[%s7 + $0x78] sm:$0xff]
  %v1874 = vld [vmem:[%s7 + $0x80] sm:$0xff]
  %v1875 = vld [vmem:[%s7 + $0x88] sm:$0xff]
  %v1876 = vld [vmem:[%s7 + $0x90] sm:$0xff]
  %v1877 = vld [vmem:[%s7 + $0x98] sm:$0xff]
  %v1878 = vld [vmem:[%s7 + $0xa0] sm:$0xff]
  %v1879 = vld [vmem:[%s7 + $0xa8] sm:$0xff]
  %v1880 = vld [vmem:[%s7 + $0xb0] sm:$0xff]
  %v1881 = vld [vmem:[%s7 + $0xb8] sm:$0xff]
  %v1882 = vld [vmem:[%s7 + $0xc0] sm:$0xff]
  %v1883 = vld [vmem:[%s7 + $0xc8] sm:$0xff]
  %v1884 = vld [vmem:[%s7 + $0xd0] sm:$0xff]
  %v1885 = vld [vmem:[%s7 + $0xd8] sm:$0xff]
  %v1886 = vld [vmem:[%s7 + $0xe0] sm:$0xff]
  %v1887 = vld [vmem:[%s7 + $0xe8] sm:$0xff]
  %v1888 = vld [vmem:[%s7 + $0xf0] sm:$0xff]
  %v1889 = vld [vmem:[%s7 + $0xf8] sm:$0xff]
  %v1890 = vld [vmem:[%s7 + $0x100] sm:$0xff]
  %v1891 = vld [vmem:[%s7 + $0x108] sm:$0xff]
  %v1892 = vld [vmem:[%s7 + $0x110] sm:$0xff]
  %v1893 = vld [vmem:[%s7 + $0x118] sm:$0xff]
  %v1894 = vld [vmem:[%s7 + $0x120] sm:$0xff]
  %v1895 = vld [vmem:[%s7 + $0x128] sm:$0xff]
  %v1896 = vld [vmem:[%s7 + $0x130] sm:$0xff]
  %v1897 = vld [vmem:[%s7 + $0x138] sm:$0xff]
  %v1898 = vld [vmem:[%s7 + $0x140] sm:$0xff]
  %v1899 = vld [vmem:[%s7 + $0x148] sm:$0xff]
  %v1900 = vld [vmem:[%s7 + $0x150] sm:$0xff]
  %v1901 = vld [vmem:[%s7 + $0x158] sm:$0xff]
  %v1902 = vld [vmem:[%s7 + $0x160] sm:$0xff]
  %v1903 = vld [vmem:[%s7 + $0x168] sm:$0xff]
  %v1904 = vld [vmem:[%s7 + $0x170] sm:$0xff]
  %v1905 = vld [vmem:[%s7 + $0x178] sm:$0xff]
  %v1906 = vld [vmem:[%s7 + $0x180] sm:$0xff]
  %v1907 = vld [vmem:[%s7 + $0x188] sm:$0xff]
  %v1908 = vld [vmem:[%s7 + $0x190] sm:$0xff]
  %v1909 = vld [vmem:[%s7 + $0x198] sm:$0xff]
  %v1910 = vld [vmem:[%s7 + $0x1a0] sm:$0xff]
  %v1911 = vld [vmem:[%s7 + $0x1a8] sm:$0xff]
  %v1912 = vld [vmem:[%s7 + $0x1b0] sm:$0xff]
  %v1913 = vld [vmem:[%s7 + $0x1b8] sm:$0xff]
  %v1914 = vld [vmem:[%s7 + $0x1c0] sm:$0xff]
  %v1915 = vld [vmem:[%s7 + $0x1c8] sm:$0xff]
  %v1916 = vld [vmem:[%s7 + $0x1d0] sm:$0xff]
  %v1917 = vld [vmem:[%s7 + $0x1d8] sm:$0xff]
  %v1918 = vld [vmem:[%s7 + $0x1e0] sm:$0xff]
  %v1919 = vld [vmem:[%s7 + $0x1e8] sm:$0xff]
  %v1920 = vld [vmem:[%s7 + $0x1f0] sm:$0xff]
  %v1921 = vld [vmem:[%s7 + $0x1f8] sm:$0xff]
  %v1922 = vld [vmem:[%s7 + $0x200] sm:$0xff]
  %v1923 = vld [vmem:[%s7 + $0x208] sm:$0xff]
  %v1924 = vld [vmem:[%s7 + $0x210] sm:$0xff]
  %v1925 = vld [vmem:[%s7 + $0x218] sm:$0xff]
  %v1926 = vld [vmem:[%s7 + $0x220] sm:$0xff]
  %v1927 = vld [vmem:[%s7 + $0x228] sm:$0xff]
  %v1928 = vld [vmem:[%s7 + $0x230] sm:$0xff]
  %v1929 = vld [vmem:[%s7 + $0x238] sm:$0xff]
  %v1930 = vld [vmem:[%s7 + $0x240] sm:$0xff]
  %v1931 = vld [vmem:[%s7 + $0x248] sm:$0xff]
  %v1932 = vld [vmem:[%s7 + $0x250] sm:$0xff]
  %v1933 = vld [vmem:[%s7 + $0x258] sm:$0xff]
  %v1934 = vld [vmem:[%s7 + $0x260] sm:$0xff]
  %v1935 = vld [vmem:[%s7 + $0x268] sm:$0xff]
  %v1936 = vld [vmem:[%s7 + $0x270] sm:$0xff]
  %v1937 = vld [vmem:[%s7 + $0x278] sm:$0xff]
  %v1938 = vld [vmem:[%s7 + $0x280] sm:$0xff]
  %v1939 = vld [vmem:[%s7 + $0x288] sm:$0xff]
  %v1940 = vld [vmem:[%s7 + $0x290] sm:$0xff]
  %v1941 = vld [vmem:[%s7 + $0x298] sm:$0xff]
  %v1942 = vld [vmem:[%s7 + $0x2a0] sm:$0xff]
  %v1943 = vld [vmem:[%s7 + $0x2a8] sm:$0xff]
  %v1944 = vld [vmem:[%s7 + $0x2b0] sm:$0xff]
  %v1945 = vld [vmem:[%s7 + $0x2b8] sm:$0xff]
  %v1946 = vld [vmem:[%s7 + $0x2c0] sm:$0xff]
  %v1947 = vld [vmem:[%s7 + $0x2c8] sm:$0xff]
  %v1948 = vld [vmem:[%s7 + $0x2d0] sm:$0xff]
  %v1949 = vld [vmem:[%s7 + $0x2d8] sm:$0xff]
  %v1950 = vld [vmem:[%s7 + $0x2e0] sm:$0xff]
  %v1951 = vld [vmem:[%s7 + $0x2e8] sm:$0xff]
  %v1952 = vld [vmem:[%s7 + $0x2f0] sm:$0xff]
  %v1953 = vld [vmem:[%s7 + $0x2f8] sm:$0xff]
  %v1954 = vld [vmem:[%s7 + $0x300] sm:$0xff]
  %v1955 = vld [vmem:[%s7 + $0x308] sm:$0xff]
  %v1956 = vld [vmem:[%s7 + $0x310] sm:$0xff]
  %v1957 = vld [vmem:[%s7 + $0x318] sm:$0xff]
  %v1958 = vld [vmem:[%s7 + $0x320] sm:$0xff]
  %v1959 = vld [vmem:[%s7 + $0x328] sm:$0xff]
  %v1960 = vld [vmem:[%s7 + $0x330] sm:$0xff]
  %v1961 = vld [vmem:[%s7 + $0x338] sm:$0xff]
  %v1962 = vld [vmem:[%s7 + $0x340] sm:$0xff]
  %v1963 = vld [vmem:[%s7 + $0x348] sm:$0xff]
  %v1964 = vld [vmem:[%s7 + $0x350] sm:$0xff]
  %v1965 = vld [vmem:[%s7 + $0x358] sm:$0xff]
  %v1966 = vld [vmem:[%s7 + $0x360] sm:$0xff]
  %v1967 = vld [vmem:[%s7 + $0x368] sm:$0xff]
  %v1968 = vld [vmem:[%s7 + $0x370] sm:$0xff]
  %v1969 = vld [vmem:[%s7 + $0x378] sm:$0xff]
  %v1970 = vld [vmem:[%s7 + $0x380] sm:$0xff]
  %v1971 = vld [vmem:[%s7 + $0x388] sm:$0xff]
  %v1972 = vld [vmem:[%s7 + $0x390] sm:$0xff]
  %v1973 = vld [vmem:[%s7 + $0x398] sm:$0xff]
  %v1974 = vld [vmem:[%s7 + $0x3a0] sm:$0xff]
  %v1975 = vld [vmem:[%s7 + $0x3a8] sm:$0xff]
  %v1976 = vld [vmem:[%s7 + $0x3b0] sm:$0xff]
  %v1977 = vld [vmem:[%s7 + $0x3b8] sm:$0xff]
  %v1978 = vld [vmem:[%s7 + $0x3c0] sm:$0xff]
  %v1979 = vld [vmem:[%s7 + $0x3c8] sm:$0xff]
  %v1980 = vld [vmem:[%s7 + $0x3d0] sm:$0xff]
  %v1981 = vld [vmem:[%s7 + $0x3d8] sm:$0xff]
  %v1982 = vld [vmem:[%s7 + $0x3e0] sm:$0xff]
  %v1983 = vld [vmem:[%s7 + $0x3e8] sm:$0xff]
  %v1984 = vld [vmem:[%s7 + $0x3f0] sm:$0xff]
  %v1985 = vld [vmem:[%s7 + $0x3f8] sm:$0xff]
  %v1986 = vld [vmem:[%s8] sm:$0x1]
  %v1988 = vlaneseq
  %v1989 = vshrl.u32 %v1988, 7
  %v1990 = vsub.s32 0, %v1989
  %v1991 = vrot.slane %v1986, %v1990
  %1993 = vmatprep.subr.mxu0 0.0
  %1994 = vmatpush1.msra.mxu0 %v1858
  %1995 = vmatprep.subr.mxu0 0.0
  %1996 = vmatpush1.msra.mxu0 %v1859
  %1997 = vmatprep.subr.mxu0 0.0
  %1998 = vmatpush1.msra.mxu0 %v1860
  %1999 = vmatprep.subr.mxu0 0.0
  %2000 = vmatpush1.msra.mxu0 %v1861
  %2001 = vmatprep.subr.mxu0 0.0
  %2002 = vmatpush1.msra.mxu0 %v1862
  %2003 = vmatprep.subr.mxu0 0.0
  %2004 = vmatpush1.msra.mxu0 %v1863
  %2005 = vmatprep.subr.mxu0 0.0
  %2006 = vmatpush1.msra.mxu0 %v1864
  %2007 = vmatprep.subr.mxu0 0.0
  %2008 = vmatpush1.msra.mxu0 %v1865
  %2009 = vmatprep.subr.mxu0 0.0
  %2010 = vmatpush1.msra.mxu0 %v1866
  %2011 = vmatprep.subr.mxu0 0.0
  %2012 = vmatpush1.msra.mxu0 %v1867
  %2013 = vmatprep.subr.mxu0 0.0
  %2014 = vmatpush1.msra.mxu0 %v1868
  %2015 = vmatprep.subr.mxu0 0.0
  %2016 = vmatpush1.msra.mxu0 %v1869
  %2017 = vmatprep.subr.mxu0 0.0
  %2018 = vmatpush1.msra.mxu0 %v1870
  %2019 = vmatprep.subr.mxu0 0.0
  %2020 = vmatpush1.msra.mxu0 %v1871
  %2021 = vmatprep.subr.mxu0 0.0
  %2022 = vmatpush1.msra.mxu0 %v1872
  %2023 = vmatprep.subr.mxu0 0.0
  %2024 = vmatpush1.msra.mxu0 %v1873
  %2025 = vmatprep.subr.mxu0 0.0
  %2026 = vmatpush1.msra.mxu0 %v1874
  %2027 = vmatprep.subr.mxu0 0.0
  %2028 = vmatpush1.msra.mxu0 %v1875
  %2029 = vmatprep.subr.mxu0 0.0
  %2030 = vmatpush1.msra.mxu0 %v1876
  %2031 = vmatprep.subr.mxu0 0.0
  %2032 = vmatpush1.msra.mxu0 %v1877
  %2033 = vmatprep.subr.mxu0 0.0
  %2034 = vmatpush1.msra.mxu0 %v1878
  %2035 = vmatprep.subr.mxu0 0.0
  %2036 = vmatpush1.msra.mxu0 %v1879
  %2037 = vmatprep.subr.mxu0 0.0
  %2038 = vmatpush1.msra.mxu0 %v1880
  %2039 = vmatprep.subr.mxu0 0.0
  %2040 = vmatpush1.msra.mxu0 %v1881
  %2041 = vmatprep.subr.mxu0 0.0
  %2042 = vmatpush1.msra.mxu0 %v1882
  %2043 = vmatprep.subr.mxu0 0.0
  %2044 = vmatpush1.msra.mxu0 %v1883
  %2045 = vmatprep.subr.mxu0 0.0
  %2046 = vmatpush1.msra.mxu0 %v1884
  %2047 = vmatprep.subr.mxu0 0.0
  %2048 = vmatpush1.msra.mxu0 %v1885
  %2049 = vmatprep.subr.mxu0 0.0
  %2050 = vmatpush1.msra.mxu0 %v1886
  %2051 = vmatprep.subr.mxu0 0.0
  %2052 = vmatpush1.msra.mxu0 %v1887
  %2053 = vmatprep.subr.mxu0 0.0
  %2054 = vmatpush1.msra.mxu0 %v1888
  %2055 = vmatprep.subr.mxu0 0.0
  %2056 = vmatpush1.msra.mxu0 %v1889
  %2057 = vmatprep.mubr.f32.mxu0 %v1843
  %2058 = vmatmul.mubr.f32.gmra.mrb[0].mxu0 %v1842
  %v2059 = vpop.f32.mrb[0].mxu0
  %v2060 = vadd.f32 %v1991, %v2059
  %v2061 = vpop.f32.mrb[0].mxu0
  %2062 = vdwg.mxu0
  %2063 = vmatprep.subr.mxu0 0.0
  %2064 = vmatpush1.msra.mxu0 %v1890
  %2065 = vmatprep.subr.mxu0 0.0
  %2066 = vmatpush1.msra.mxu0 %v1891
  %2067 = vmatprep.subr.mxu0 0.0
  %2068 = vmatpush1.msra.mxu0 %v1892
  %2069 = vmatprep.subr.mxu0 0.0
  %2070 = vmatpush1.msra.mxu0 %v1893
  %2071 = vmatprep.subr.mxu0 0.0
  %2072 = vmatpush1.msra.mxu0 %v1894
  %2073 = vmatprep.subr.mxu0 0.0
  %2074 = vmatpush1.msra.mxu0 %v1895
  %2075 = vmatprep.subr.mxu0 0.0
  %2076 = vmatpush1.msra.mxu0 %v1896
  %2077 = vmatprep.subr.mxu0 0.0
  %2078 = vmatpush1.msra.mxu0 %v1897
  %2079 = vmatprep.subr.mxu0 0.0
  %2080 = vmatpush1.msra.mxu0 %v1898
  %2081 = vmatprep.subr.mxu0 0.0
  %2082 = vmatpush1.msra.mxu0 %v1899
  %2083 = vmatprep.subr.mxu0 0.0
  %2084 = vmatpush1.msra.mxu0 %v1900
  %2085 = vmatprep.subr.mxu0 0.0
  %2086 = vmatpush1.msra.mxu0 %v1901
  %2087 = vmatprep.subr.mxu0 0.0
  %2088 = vmatpush1.msra.mxu0 %v1902
  %2089 = vmatprep.subr.mxu0 0.0
  %2090 = vmatpush1.msra.mxu0 %v1903
  %2091 = vmatprep.subr.mxu0 0.0
  %2092 = vmatpush1.msra.mxu0 %v1904
  %2093 = vmatprep.subr.mxu0 0.0
  %2094 = vmatpush1.msra.mxu0 %v1905
  %2095 = vmatprep.subr.mxu0 0.0
  %2096 = vmatpush1.msra.mxu0 %v1906
  %2097 = vmatprep.subr.mxu0 0.0
  %2098 = vmatpush1.msra.mxu0 %v1907
  %2099 = vmatprep.subr.mxu0 0.0
  %2100 = vmatpush1.msra.mxu0 %v1908
  %2101 = vmatprep.subr.mxu0 0.0
  %2102 = vmatpush1.msra.mxu0 %v1909
  %2103 = vmatprep.subr.mxu0 0.0
  %2104 = vmatpush1.msra.mxu0 %v1910
  %2105 = vmatprep.subr.mxu0 0.0
  %2106 = vmatpush1.msra.mxu0 %v1911
  %2107 = vmatprep.subr.mxu0 0.0
  %2108 = vmatpush1.msra.mxu0 %v1912
  %2109 = vmatprep.subr.mxu0 0.0
  %2110 = vmatpush1.msra.mxu0 %v1913
  %2111 = vmatprep.subr.mxu0 0.0
  %2112 = vmatpush1.msra.mxu0 %v1914
  %2113 = vmatprep.subr.mxu0 0.0
  %2114 = vmatpush1.msra.mxu0 %v1915
  %2115 = vmatprep.subr.mxu0 0.0
  %2116 = vmatpush1.msra.mxu0 %v1916
  %2117 = vmatprep.subr.mxu0 0.0
  %2118 = vmatpush1.msra.mxu0 %v1917
  %2119 = vmatprep.subr.mxu0 0.0
  %2120 = vmatpush1.msra.mxu0 %v1918
  %2121 = vmatprep.subr.mxu0 0.0
  %2122 = vmatpush1.msra.mxu0 %v1919
  %2123 = vmatprep.subr.mxu0 0.0
  %2124 = vmatpush1.msra.mxu0 %v1920
  %2125 = vmatprep.subr.mxu0 0.0
  %2126 = vmatpush1.msra.mxu0 %v1921
  %2127 = vmatprep.mubr.f32.mxu0 %v1845
  %2128 = vmatmul.mubr.f32.gmra.mrb[0].mxu0 %v1844
  %v2129 = vpop.f32.mrb[0].mxu0
  %v2130 = vadd.f32 %v2060, %v2129
  %v2131 = vpop.f32.mrb[0].mxu0
  %2132 = vdwg.mxu0
  %2133 = vmatprep.subr.mxu0 0.0
  %2134 = vmatpush1.msra.mxu0 %v1922
  %2135 = vmatprep.subr.mxu0 0.0
  %2136 = vmatpush1.msra.mxu0 %v1923
  %2137 = vmatprep.subr.mxu0 0.0
  %2138 = vmatpush1.msra.mxu0 %v1924
  %2139 = vmatprep.subr.mxu0 0.0
  %2140 = vmatpush1.msra.mxu0 %v1925
  %2141 = vmatprep.subr.mxu0 0.0
  %2142 = vmatpush1.msra.mxu0 %v1926
  %2143 = vmatprep.subr.mxu0 0.0
  %2144 = vmatpush1.msra.mxu0 %v1927
  %2145 = vmatprep.subr.mxu0 0.0
  %2146 = vmatpush1.msra.mxu0 %v1928
  %2147 = vmatprep.subr.mxu0 0.0
  %2148 = vmatpush1.msra.mxu0 %v1929
  %2149 = vmatprep.subr.mxu0 0.0
  %2150 = vmatpush1.msra.mxu0 %v1930
  %2151 = vmatprep.subr.mxu0 0.0
  %2152 = vmatpush1.msra.mxu0 %v1931
  %2153 = vmatprep.subr.mxu0 0.0
  %2154 = vmatpush1.msra.mxu0 %v1932
  %2155 = vmatprep.subr.mxu0 0.0
  %2156 = vmatpush1.msra.mxu0 %v1933
  %2157 = vmatprep.subr.mxu0 0.0
  %2158 = vmatpush1.msra.mxu0 %v1934
  %2159 = vmatprep.subr.mxu0 0.0
  %2160 = vmatpush1.msra.mxu0 %v1935
  %2161 = vmatprep.subr.mxu0 0.0
  %2162 = vmatpush1.msra.mxu0 %v1936
  %2163 = vmatprep.subr.mxu0 0.0
  %2164 = vmatpush1.msra.mxu0 %v1937
  %2165 = vmatprep.subr.mxu0 0.0
  %2166 = vmatpush1.msra.mxu0 %v1938
  %2167 = vmatprep.subr.mxu0 0.0
  %2168 = vmatpush1.msra.mxu0 %v1939
  %2169 = vmatprep.subr.mxu0 0.0
  %2170 = vmatpush1.msra.mxu0 %v1940
  %2171 = vmatprep.subr.mxu0 0.0
  %2172 = vmatpush1.msra.mxu0 %v1941
  %2173 = vmatprep.subr.mxu0 0.0
  %2174 = vmatpush1.msra.mxu0 %v1942
  %2175 = vmatprep.subr.mxu0 0.0
  %2176 = vmatpush1.msra.mxu0 %v1943
  %2177 = vmatprep.subr.mxu0 0.0
  %2178 = vmatpush1.msra.mxu0 %v1944
  %2179 = vmatprep.subr.mxu0 0.0
  %2180 = vmatpush1.msra.mxu0 %v1945
  %2181 = vmatprep.subr.mxu0 0.0
  %2182 = vmatpush1.msra.mxu0 %v1946
  %2183 = vmatprep.subr.mxu0 0.0
  %2184 = vmatpush1.msra.mxu0 %v1947
  %2185 = vmatprep.subr.mxu0 0.0
  %2186 = vmatpush1.msra.mxu0 %v1948
  %2187 = vmatprep.subr.mxu0 0.0
  %2188 = vmatpush1.msra.mxu0 %v1949
  %2189 = vmatprep.subr.mxu0 0.0
  %2190 = vmatpush1.msra.mxu0 %v1950
  %2191 = vmatprep.subr.mxu0 0.0
  %2192 = vmatpush1.msra.mxu0 %v1951
  %2193 = vmatprep.subr.mxu0 0.0
  %2194 = vmatpush1.msra.mxu0 %v1952
  %2195 = vmatprep.subr.mxu0 0.0
  %2196 = vmatpush1.msra.mxu0 %v1953
  %2197 = vmatprep.mubr.f32.mxu0 %v1847
  %2198 = vmatmul.mubr.f32.gmra.mrb[0].mxu0 %v1846
  %v2199 = vpop.f32.mrb[0].mxu0
  %v2200 = vadd.f32 %v2130, %v2199
  %v2201 = vpop.f32.mrb[0].mxu0
  %2202 = vdwg.mxu0
  %2203 = vmatprep.subr.mxu0 0.0
  %2204 = vmatpush1.msra.mxu0 %v1954
  %2205 = vmatprep.subr.mxu0 0.0
  %2206 = vmatpush1.msra.mxu0 %v1955
  %2207 = vmatprep.subr.mxu0 0.0
  %2208 = vmatpush1.msra.mxu0 %v1956
  %2209 = vmatprep.subr.mxu0 0.0
  %2210 = vmatpush1.msra.mxu0 %v1957
  %2211 = vmatprep.subr.mxu0 0.0
  %2212 = vmatpush1.msra.mxu0 %v1958
  %2213 = vmatprep.subr.mxu0 0.0
  %2214 = vmatpush1.msra.mxu0 %v1959
  %2215 = vmatprep.subr.mxu0 0.0
  %2216 = vmatpush1.msra.mxu0 %v1960
  %2217 = vmatprep.subr.mxu0 0.0
  %2218 = vmatpush1.msra.mxu0 %v1961
  %2219 = vmatprep.subr.mxu0 0.0
  %2220 = vmatpush1.msra.mxu0 %v1962
  %2221 = vmatprep.subr.mxu0 0.0
  %2222 = vmatpush1.msra.mxu0 %v1963
  %2223 = vmatprep.subr.mxu0 0.0
  %2224 = vmatpush1.msra.mxu0 %v1964
  %2225 = vmatprep.subr.mxu0 0.0
  %2226 = vmatpush1.msra.mxu0 %v1965
  %2227 = vmatprep.subr.mxu0 0.0
  %2228 = vmatpush1.msra.mxu0 %v1966
  %2229 = vmatprep.subr.mxu0 0.0
  %2230 = vmatpush1.msra.mxu0 %v1967
  %2231 = vmatprep.subr.mxu0 0.0
  %2232 = vmatpush1.msra.mxu0 %v1968
  %2233 = vmatprep.subr.mxu0 0.0
  %2234 = vmatpush1.msra.mxu0 %v1969
  %2235 = vmatprep.subr.mxu0 0.0
  %2236 = vmatpush1.msra.mxu0 %v1970
  %2237 = vmatprep.subr.mxu0 0.0
  %2238 = vmatpush1.msra.mxu0 %v1971
  %2239 = vmatprep.subr.mxu0 0.0
  %2240 = vmatpush1.msra.mxu0 %v1972
  %2241 = vmatprep.subr.mxu0 0.0
  %2242 = vmatpush1.msra.mxu0 %v1973
  %2243 = vmatprep.subr.mxu0 0.0
  %2244 = vmatpush1.msra.mxu0 %v1974
  %2245 = vmatprep.subr.mxu0 0.0
  %2246 = vmatpush1.msra.mxu0 %v1975
  %2247 = vmatprep.subr.mxu0 0.0
  %2248 = vmatpush1.msra.mxu0 %v1976
  %2249 = vmatprep.subr.mxu0 0.0
  %2250 = vmatpush1.msra.mxu0 %v1977
  %2251 = vmatprep.subr.mxu0 0.0
  %2252 = vmatpush1.msra.mxu0 %v1978
  %2253 = vmatprep.subr.mxu0 0.0
  %2254 = vmatpush1.msra.mxu0 %v1979
  %2255 = vmatprep.subr.mxu0 0.0
  %2256 = vmatpush1.msra.mxu0 %v1980
  %2257 = vmatprep.subr.mxu0 0.0
  %2258 = vmatpush1.msra.mxu0 %v1981
  %2259 = vmatprep.subr.mxu0 0.0
  %2260 = vmatpush1.msra.mxu0 %v1982
  %2261 = vmatprep.subr.mxu0 0.0
  %2262 = vmatpush1.msra.mxu0 %v1983
  %2263 = vmatprep.subr.mxu0 0.0
  %2264 = vmatpush1.msra.mxu0 %v1984
  %2265 = vmatprep.subr.mxu0 0.0
  %2266 = vmatpush1.msra.mxu0 %v1985
  %2267 = vmatprep.mubr.f32.mxu0 %v1849
  %2268 = vmatmul.mubr.f32.gmra.mrb[0].mxu0 %v1848
  %v2269 = vpop.f32.mrb[0].mxu0
  %v2270 = vadd.f32 %v2200, %v2269
  %v2271 = vpop.f32.mrb[0].mxu0
  %2272 = vdwg.mxu0
  %2273 = vst [vmem:[%s11] sm:$0x3] %v2270
  %v2274 = vld [vmem:[%s9] sm:$0xff]
  %v2275 = vld [vmem:[%s9 + $0x8] sm:$0xff]
  %v2276 = vld [vmem:[%s9 + $0x10] sm:$0xff]
  %v2277 = vld [vmem:[%s9 + $0x18] sm:$0xff]
  %v2278 = vld [vmem:[%s9 + $0x20] sm:$0xff]
  %v2279 = vld [vmem:[%s9 + $0x28] sm:$0xff]
  %v2280 = vld [vmem:[%s9 + $0x30] sm:$0xff]
  %v2281 = vld [vmem:[%s9 + $0x38] sm:$0xff]
  %v2282 = vld [vmem:[%s9 + $0x40] sm:$0xff]
  %v2283 = vld [vmem:[%s9 + $0x48] sm:$0xff]
  %v2284 = vld [vmem:[%s9 + $0x50] sm:$0xff]
  %v2285 = vld [vmem:[%s9 + $0x58] sm:$0xff]
  %v2286 = vld [vmem:[%s9 + $0x60] sm:$0xff]
  %v2287 = vld [vmem:[%s9 + $0x68] sm:$0xff]
  %v2288 = vld [vmem:[%s9 + $0x70] sm:$0xff]
  %v2289 = vld [vmem:[%s9 + $0x78] sm:$0xff]
  %v2290 = vld [vmem:[%s9 + $0x80] sm:$0xff]
  %v2291 = vld [vmem:[%s9 + $0x88] sm:$0xff]
  %v2292 = vld [vmem:[%s9 + $0x90] sm:$0xff]
  %v2293 = vld [vmem:[%s9 + $0x98] sm:$0xff]
  %v2294 = vld [vmem:[%s9 + $0xa0] sm:$0xff]
  %v2295 = vld [vmem:[%s9 + $0xa8] sm:$0xff]
  %v2296 = vld [vmem:[%s9 + $0xb0] sm:$0xff]
  %v2297 = vld [vmem:[%s9 + $0xb8] sm:$0xff]
  %v2298 = vld [vmem:[%s9 + $0xc0] sm:$0xff]
  %v2299 = vld [vmem:[%s9 + $0xc8] sm:$0xff]
  %v2300 = vld [vmem:[%s9 + $0xd0] sm:$0xff]
  %v2301 = vld [vmem:[%s9 + $0xd8] sm:$0xff]
  %v2302 = vld [vmem:[%s9 + $0xe0] sm:$0xff]
  %v2303 = vld [vmem:[%s9 + $0xe8] sm:$0xff]
  %v2304 = vld [vmem:[%s9 + $0xf0] sm:$0xff]
  %v2305 = vld [vmem:[%s9 + $0xf8] sm:$0xff]
  %v2306 = vld [vmem:[%s9 + $0x100] sm:$0xff]
  %v2307 = vld [vmem:[%s9 + $0x108] sm:$0xff]
  %v2308 = vld [vmem:[%s9 + $0x110] sm:$0xff]
  %v2309 = vld [vmem:[%s9 + $0x118] sm:$0xff]
  %v2310 = vld [vmem:[%s9 + $0x120] sm:$0xff]
  %v2311 = vld [vmem:[%s9 + $0x128] sm:$0xff]
  %v2312 = vld [vmem:[%s9 + $0x130] sm:$0xff]
  %v2313 = vld [vmem:[%s9 + $0x138] sm:$0xff]
  %v2314 = vld [vmem:[%s9 + $0x140] sm:$0xff]
  %v2315 = vld [vmem:[%s9 + $0x148] sm:$0xff]
  %v2316 = vld [vmem:[%s9 + $0x150] sm:$0xff]
  %v2317 = vld [vmem:[%s9 + $0x158] sm:$0xff]
  %v2318 = vld [vmem:[%s9 + $0x160] sm:$0xff]
  %v2319 = vld [vmem:[%s9 + $0x168] sm:$0xff]
  %v2320 = vld [vmem:[%s9 + $0x170] sm:$0xff]
  %v2321 = vld [vmem:[%s9 + $0x178] sm:$0xff]
  %v2322 = vld [vmem:[%s9 + $0x180] sm:$0xff]
  %v2323 = vld [vmem:[%s9 + $0x188] sm:$0xff]
  %v2324 = vld [vmem:[%s9 + $0x190] sm:$0xff]
  %v2325 = vld [vmem:[%s9 + $0x198] sm:$0xff]
  %v2326 = vld [vmem:[%s9 + $0x1a0] sm:$0xff]
  %v2327 = vld [vmem:[%s9 + $0x1a8] sm:$0xff]
  %v2328 = vld [vmem:[%s9 + $0x1b0] sm:$0xff]
  %v2329 = vld [vmem:[%s9 + $0x1b8] sm:$0xff]
  %v2330 = vld [vmem:[%s9 + $0x1c0] sm:$0xff]
  %v2331 = vld [vmem:[%s9 + $0x1c8] sm:$0xff]
  %v2332 = vld [vmem:[%s9 + $0x1d0] sm:$0xff]
  %v2333 = vld [vmem:[%s9 + $0x1d8] sm:$0xff]
  %v2334 = vld [vmem:[%s9 + $0x1e0] sm:$0xff]
  %v2335 = vld [vmem:[%s9 + $0x1e8] sm:$0xff]
  %v2336 = vld [vmem:[%s9 + $0x1f0] sm:$0xff]
  %v2337 = vld [vmem:[%s9 + $0x1f8] sm:$0xff]
  %v2338 = vld [vmem:[%s9 + $0x200] sm:$0xff]
  %v2339 = vld [vmem:[%s9 + $0x208] sm:$0xff]
  %v2340 = vld [vmem:[%s9 + $0x210] sm:$0xff]
  %v2341 = vld [vmem:[%s9 + $0x218] sm:$0xff]
  %v2342 = vld [vmem:[%s9 + $0x220] sm:$0xff]
  %v2343 = vld [vmem:[%s9 + $0x228] sm:$0xff]
  %v2344 = vld [vmem:[%s9 + $0x230] sm:$0xff]
  %v2345 = vld [vmem:[%s9 + $0x238] sm:$0xff]
  %v2346 = vld [vmem:[%s9 + $0x240] sm:$0xff]
  %v2347 = vld [vmem:[%s9 + $0x248] sm:$0xff]
  %v2348 = vld [vmem:[%s9 + $0x250] sm:$0xff]
  %v2349 = vld [vmem:[%s9 + $0x258] sm:$0xff]
  %v2350 = vld [vmem:[%s9 + $0x260] sm:$0xff]
  %v2351 = vld [vmem:[%s9 + $0x268] sm:$0xff]
  %v2352 = vld [vmem:[%s9 + $0x270] sm:$0xff]
  %v2353 = vld [vmem:[%s9 + $0x278] sm:$0xff]
  %v2354 = vld [vmem:[%s9 + $0x280] sm:$0xff]
  %v2355 = vld [vmem:[%s9 + $0x288] sm:$0xff]
  %v2356 = vld [vmem:[%s9 + $0x290] sm:$0xff]
  %v2357 = vld [vmem:[%s9 + $0x298] sm:$0xff]
  %v2358 = vld [vmem:[%s9 + $0x2a0] sm:$0xff]
  %v2359 = vld [vmem:[%s9 + $0x2a8] sm:$0xff]
  %v2360 = vld [vmem:[%s9 + $0x2b0] sm:$0xff]
  %v2361 = vld [vmem:[%s9 + $0x2b8] sm:$0xff]
  %v2362 = vld [vmem:[%s9 + $0x2c0] sm:$0xff]
  %v2363 = vld [vmem:[%s9 + $0x2c8] sm:$0xff]
  %v2364 = vld [vmem:[%s9 + $0x2d0] sm:$0xff]
  %v2365 = vld [vmem:[%s9 + $0x2d8] sm:$0xff]
  %v2366 = vld [vmem:[%s9 + $0x2e0] sm:$0xff]
  %v2367 = vld [vmem:[%s9 + $0x2e8] sm:$0xff]
  %v2368 = vld [vmem:[%s9 + $0x2f0] sm:$0xff]
  %v2369 = vld [vmem:[%s9 + $0x2f8] sm:$0xff]
  %v2370 = vld [vmem:[%s9 + $0x300] sm:$0xff]
  %v2371 = vld [vmem:[%s9 + $0x308] sm:$0xff]
  %v2372 = vld [vmem:[%s9 + $0x310] sm:$0xff]
  %v2373 = vld [vmem:[%s9 + $0x318] sm:$0xff]
  %v2374 = vld [vmem:[%s9 + $0x320] sm:$0xff]
  %v2375 = vld [vmem:[%s9 + $0x328] sm:$0xff]
  %v2376 = vld [vmem:[%s9 + $0x330] sm:$0xff]
  %v2377 = vld [vmem:[%s9 + $0x338] sm:$0xff]
  %v2378 = vld [vmem:[%s9 + $0x340] sm:$0xff]
  %v2379 = vld [vmem:[%s9 + $0x348] sm:$0xff]
  %v2380 = vld [vmem:[%s9 + $0x350] sm:$0xff]
  %v2381 = vld [vmem:[%s9 + $0x358] sm:$0xff]
  %v2382 = vld [vmem:[%s9 + $0x360] sm:$0xff]
  %v2383 = vld [vmem:[%s9 + $0x368] sm:$0xff]
  %v2384 = vld [vmem:[%s9 + $0x370] sm:$0xff]
  %v2385 = vld [vmem:[%s9 + $0x378] sm:$0xff]
  %v2386 = vld [vmem:[%s9 + $0x380] sm:$0xff]
  %v2387 = vld [vmem:[%s9 + $0x388] sm:$0xff]
  %v2388 = vld [vmem:[%s9 + $0x390] sm:$0xff]
  %v2389 = vld [vmem:[%s9 + $0x398] sm:$0xff]
  %v2390 = vld [vmem:[%s9 + $0x3a0] sm:$0xff]
  %v2391 = vld [vmem:[%s9 + $0x3a8] sm:$0xff]
  %v2392 = vld [vmem:[%s9 + $0x3b0] sm:$0xff]
  %v2393 = vld [vmem:[%s9 + $0x3b8] sm:$0xff]
  %v2394 = vld [vmem:[%s9 + $0x3c0] sm:$0xff]
  %v2395 = vld [vmem:[%s9 + $0x3c8] sm:$0xff]
  %v2396 = vld [vmem:[%s9 + $0x3d0] sm:$0xff]
  %v2397 = vld [vmem:[%s9 + $0x3d8] sm:$0xff]
  %v2398 = vld [vmem:[%s9 + $0x3e0] sm:$0xff]
  %v2399 = vld [vmem:[%s9 + $0x3e8] sm:$0xff]
  %v2400 = vld [vmem:[%s9 + $0x3f0] sm:$0xff]
  %v2401 = vld [vmem:[%s9 + $0x3f8] sm:$0xff]
  %v2402 = vld [vmem:[%s10] sm:$0x1]
  %v2404 = vlaneseq
  %v2405 = vshrl.u32 %v2404, 7
  %v2406 = vsub.s32 0, %v2405
  %v2407 = vrot.slane %v2402, %v2406
  %2409 = vmatprep.subr.mxu0 0.0
  %2410 = vmatpush1.msra.mxu0 %v2274
  %2411 = vmatprep.subr.mxu0 0.0
  %2412 = vmatpush1.msra.mxu0 %v2275
  %2413 = vmatprep.subr.mxu0 0.0
  %2414 = vmatpush1.msra.mxu0 %v2276
  %2415 = vmatprep.subr.mxu0 0.0
  %2416 = vmatpush1.msra.mxu0 %v2277
  %2417 = vmatprep.subr.mxu0 0.0
  %2418 = vmatpush1.msra.mxu0 %v2278
  %2419 = vmatprep.subr.mxu0 0.0
  %2420 = vmatpush1.msra.mxu0 %v2279
  %2421 = vmatprep.subr.mxu0 0.0
  %2422 = vmatpush1.msra.mxu0 %v2280
  %2423 = vmatprep.subr.mxu0 0.0
  %2424 = vmatpush1.msra.mxu0 %v2281
  %2425 = vmatprep.subr.mxu0 0.0
  %2426 = vmatpush1.msra.mxu0 %v2282
  %2427 = vmatprep.subr.mxu0 0.0
  %2428 = vmatpush1.msra.mxu0 %v2283
  %2429 = vmatprep.subr.mxu0 0.0
  %2430 = vmatpush1.msra.mxu0 %v2284
  %2431 = vmatprep.subr.mxu0 0.0
  %2432 = vmatpush1.msra.mxu0 %v2285
  %2433 = vmatprep.subr.mxu0 0.0
  %2434 = vmatpush1.msra.mxu0 %v2286
  %2435 = vmatprep.subr.mxu0 0.0
  %2436 = vmatpush1.msra.mxu0 %v2287
  %2437 = vmatprep.subr.mxu0 0.0
  %2438 = vmatpush1.msra.mxu0 %v2288
  %2439 = vmatprep.subr.mxu0 0.0
  %2440 = vmatpush1.msra.mxu0 %v2289
  %2441 = vmatprep.subr.mxu0 0.0
  %2442 = vmatpush1.msra.mxu0 %v2290
  %2443 = vmatprep.subr.mxu0 0.0
  %2444 = vmatpush1.msra.mxu0 %v2291
  %2445 = vmatprep.subr.mxu0 0.0
  %2446 = vmatpush1.msra.mxu0 %v2292
  %2447 = vmatprep.subr.mxu0 0.0
  %2448 = vmatpush1.msra.mxu0 %v2293
  %2449 = vmatprep.subr.mxu0 0.0
  %2450 = vmatpush1.msra.mxu0 %v2294
  %2451 = vmatprep.subr.mxu0 0.0
  %2452 = vmatpush1.msra.mxu0 %v2295
  %2453 = vmatprep.subr.mxu0 0.0
  %2454 = vmatpush1.msra.mxu0 %v2296
  %2455 = vmatprep.subr.mxu0 0.0
  %2456 = vmatpush1.msra.mxu0 %v2297
  %2457 = vmatprep.subr.mxu0 0.0
  %2458 = vmatpush1.msra.mxu0 %v2298
  %2459 = vmatprep.subr.mxu0 0.0
  %2460 = vmatpush1.msra.mxu0 %v2299
  %2461 = vmatprep.subr.mxu0 0.0
  %2462 = vmatpush1.msra.mxu0 %v2300
  %2463 = vmatprep.subr.mxu0 0.0
  %2464 = vmatpush1.msra.mxu0 %v2301
  %2465 = vmatprep.subr.mxu0 0.0
  %2466 = vmatpush1.msra.mxu0 %v2302
  %2467 = vmatprep.subr.mxu0 0.0
  %2468 = vmatpush1.msra.mxu0 %v2303
  %2469 = vmatprep.subr.mxu0 0.0
  %2470 = vmatpush1.msra.mxu0 %v2304
  %2471 = vmatprep.subr.mxu0 0.0
  %2472 = vmatpush1.msra.mxu0 %v2305
  %2473 = vmatprep.mubr.f32.mxu0 %v1851
  %2474 = vmatmul.mubr.f32.gmra.mrb[0].mxu0 %v1850
  %v2475 = vpop.f32.mrb[0].mxu0
  %v2476 = vadd.f32 %v2407, %v2475
  %v2477 = vpop.f32.mrb[0].mxu0
  %2478 = vdwg.mxu0
  %2479 = vmatprep.subr.mxu0 0.0
  %2480 = vmatpush1.msra.mxu0 %v2306
  %2481 = vmatprep.subr.mxu0 0.0
  %2482 = vmatpush1.msra.mxu0 %v2307
  %2483 = vmatprep.subr.mxu0 0.0
  %2484 = vmatpush1.msra.mxu0 %v2308
  %2485 = vmatprep.subr.mxu0 0.0
  %2486 = vmatpush1.msra.mxu0 %v2309
  %2487 = vmatprep.subr.mxu0 0.0
  %2488 = vmatpush1.msra.mxu0 %v2310
  %2489 = vmatprep.subr.mxu0 0.0
  %2490 = vmatpush1.msra.mxu0 %v2311
  %2491 = vmatprep.subr.mxu0 0.0
  %2492 = vmatpush1.msra.mxu0 %v2312
  %2493 = vmatprep.subr.mxu0 0.0
  %2494 = vmatpush1.msra.mxu0 %v2313
  %2495 = vmatprep.subr.mxu0 0.0
  %2496 = vmatpush1.msra.mxu0 %v2314
  %2497 = vmatprep.subr.mxu0 0.0
  %2498 = vmatpush1.msra.mxu0 %v2315
  %2499 = vmatprep.subr.mxu0 0.0
  %2500 = vmatpush1.msra.mxu0 %v2316
  %2501 = vmatprep.subr.mxu0 0.0
  %2502 = vmatpush1.msra.mxu0 %v2317
  %2503 = vmatprep.subr.mxu0 0.0
  %2504 = vmatpush1.msra.mxu0 %v2318
  %2505 = vmatprep.subr.mxu0 0.0
  %2506 = vmatpush1.msra.mxu0 %v2319
  %2507 = vmatprep.subr.mxu0 0.0
  %2508 = vmatpush1.msra.mxu0 %v2320
  %2509 = vmatprep.subr.mxu0 0.0
  %2510 = vmatpush1.msra.mxu0 %v2321
  %2511 = vmatprep.subr.mxu0 0.0
  %2512 = vmatpush1.msra.mxu0 %v2322
  %2513 = vmatprep.subr.mxu0 0.0
  %2514 = vmatpush1.msra.mxu0 %v2323
  %2515 = vmatprep.subr.mxu0 0.0
  %2516 = vmatpush1.msra.mxu0 %v2324
  %2517 = vmatprep.subr.mxu0 0.0
  %2518 = vmatpush1.msra.mxu0 %v2325
  %2519 = vmatprep.subr.mxu0 0.0
  %2520 = vmatpush1.msra.mxu0 %v2326
  %2521 = vmatprep.subr.mxu0 0.0
  %2522 = vmatpush1.msra.mxu0 %v2327
  %2523 = vmatprep.subr.mxu0 0.0
  %2524 = vmatpush1.msra.mxu0 %v2328
  %2525 = vmatprep.subr.mxu0 0.0
  %2526 = vmatpush1.msra.mxu0 %v2329
  %2527 = vmatprep.subr.mxu0 0.0
  %2528 = vmatpush1.msra.mxu0 %v2330
  %2529 = vmatprep.subr.mxu0 0.0
  %2530 = vmatpush1.msra.mxu0 %v2331
  %2531 = vmatprep.subr.mxu0 0.0
  %2532 = vmatpush1.msra.mxu0 %v2332
  %2533 = vmatprep.subr.mxu0 0.0
  %2534 = vmatpush1.msra.mxu0 %v2333
  %2535 = vmatprep.subr.mxu0 0.0
  %2536 = vmatpush1.msra.mxu0 %v2334
  %2537 = vmatprep.subr.mxu0 0.0
  %2538 = vmatpush1.msra.mxu0 %v2335
  %2539 = vmatprep.subr.mxu0 0.0
  %2540 = vmatpush1.msra.mxu0 %v2336
  %2541 = vmatprep.subr.mxu0 0.0
  %2542 = vmatpush1.msra.mxu0 %v2337
  %2543 = vmatprep.mubr.f32.mxu0 %v1853
  %2544 = vmatmul.mubr.f32.gmra.mrb[0].mxu0 %v1852
  %v2545 = vpop.f32.mrb[0].mxu0
  %v2546 = vadd.f32 %v2476, %v2545
  %v2547 = vpop.f32.mrb[0].mxu0
  %2548 = vdwg.mxu0
  %2549 = vmatprep.subr.mxu0 0.0
  %2550 = vmatpush1.msra.mxu0 %v2338
  %2551 = vmatprep.subr.mxu0 0.0
  %2552 = vmatpush1.msra.mxu0 %v2339
  %2553 = vmatprep.subr.mxu0 0.0
  %2554 = vmatpush1.msra.mxu0 %v2340
  %2555 = vmatprep.subr.mxu0 0.0
  %2556 = vmatpush1.msra.mxu0 %v2341
  %2557 = vmatprep.subr.mxu0 0.0
  %2558 = vmatpush1.msra.mxu0 %v2342
  %2559 = vmatprep.subr.mxu0 0.0
  %2560 = vmatpush1.msra.mxu0 %v2343
  %2561 = vmatprep.subr.mxu0 0.0
  %2562 = vmatpush1.msra.mxu0 %v2344
  %2563 = vmatprep.subr.mxu0 0.0
  %2564 = vmatpush1.msra.mxu0 %v2345
  %2565 = vmatprep.subr.mxu0 0.0
  %2566 = vmatpush1.msra.mxu0 %v2346
  %2567 = vmatprep.subr.mxu0 0.0
  %2568 = vmatpush1.msra.mxu0 %v2347
  %2569 = vmatprep.subr.mxu0 0.0
  %2570 = vmatpush1.msra.mxu0 %v2348
  %2571 = vmatprep.subr.mxu0 0.0
  %2572 = vmatpush1.msra.mxu0 %v2349
  %2573 = vmatprep.subr.mxu0 0.0
  %2574 = vmatpush1.msra.mxu0 %v2350
  %2575 = vmatprep.subr.mxu0 0.0
  %2576 = vmatpush1.msra.mxu0 %v2351
  %2577 = vmatprep.subr.mxu0 0.0
  %2578 = vmatpush1.msra.mxu0 %v2352
  %2579 = vmatprep.subr.mxu0 0.0
  %2580 = vmatpush1.msra.mxu0 %v2353
  %2581 = vmatprep.subr.mxu0 0.0
  %2582 = vmatpush1.msra.mxu0 %v2354
  %2583 = vmatprep.subr.mxu0 0.0
  %2584 = vmatpush1.msra.mxu0 %v2355
  %2585 = vmatprep.subr.mxu0 0.0
  %2586 = vmatpush1.msra.mxu0 %v2356
  %2587 = vmatprep.subr.mxu0 0.0
  %2588 = vmatpush1.msra.mxu0 %v2357
  %2589 = vmatprep.subr.mxu0 0.0
  %2590 = vmatpush1.msra.mxu0 %v2358
  %2591 = vmatprep.subr.mxu0 0.0
  %2592 = vmatpush1.msra.mxu0 %v2359
  %2593 = vmatprep.subr.mxu0 0.0
  %2594 = vmatpush1.msra.mxu0 %v2360
  %2595 = vmatprep.subr.mxu0 0.0
  %2596 = vmatpush1.msra.mxu0 %v2361
  %2597 = vmatprep.subr.mxu0 0.0
  %2598 = vmatpush1.msra.mxu0 %v2362
  %2599 = vmatprep.subr.mxu0 0.0
  %2600 = vmatpush1.msra.mxu0 %v2363
  %2601 = vmatprep.subr.mxu0 0.0
  %2602 = vmatpush1.msra.mxu0 %v2364
  %2603 = vmatprep.subr.mxu0 0.0
  %2604 = vmatpush1.msra.mxu0 %v2365
  %2605 = vmatprep.subr.mxu0 0.0
  %2606 = vmatpush1.msra.mxu0 %v2366
  %2607 = vmatprep.subr.mxu0 0.0
  %2608 = vmatpush1.msra.mxu0 %v2367
  %2609 = vmatprep.subr.mxu0 0.0
  %2610 = vmatpush1.msra.mxu0 %v2368
  %2611 = vmatprep.subr.mxu0 0.0
  %2612 = vmatpush1.msra.mxu0 %v2369
  %2613 = vmatprep.mubr.f32.mxu0 %v1855
  %2614 = vmatmul.mubr.f32.gmra.mrb[0].mxu0 %v1854
  %v2615 = vpop.f32.mrb[0].mxu0
  %v2616 = vadd.f32 %v2546, %v2615
  %v2617 = vpop.f32.mrb[0].mxu0
  %2618 = vdwg.mxu0
  %2619 = vmatprep.subr.mxu0 0.0
  %2620 = vmatpush1.msra.mxu0 %v2370
  %2621 = vmatprep.subr.mxu0 0.0
  %2622 = vmatpush1.msra.mxu0 %v2371
  %2623 = vmatprep.subr.mxu0 0.0
  %2624 = vmatpush1.msra.mxu0 %v2372
  %2625 = vmatprep.subr.mxu0 0.0
  %2626 = vmatpush1.msra.mxu0 %v2373
  %2627 = vmatprep.subr.mxu0 0.0
  %2628 = vmatpush1.msra.mxu0 %v2374
  %2629 = vmatprep.subr.mxu0 0.0
  %2630 = vmatpush1.msra.mxu0 %v2375
  %2631 = vmatprep.subr.mxu0 0.0
  %2632 = vmatpush1.msra.mxu0 %v2376
  %2633 = vmatprep.subr.mxu0 0.0
  %2634 = vmatpush1.msra.mxu0 %v2377
  %2635 = vmatprep.subr.mxu0 0.0
  %2636 = vmatpush1.msra.mxu0 %v2378
  %2637 = vmatprep.subr.mxu0 0.0
  %2638 = vmatpush1.msra.mxu0 %v2379
  %2639 = vmatprep.subr.mxu0 0.0
  %2640 = vmatpush1.msra.mxu0 %v2380
  %2641 = vmatprep.subr.mxu0 0.0
  %2642 = vmatpush1.msra.mxu0 %v2381
  %2643 = vmatprep.subr.mxu0 0.0
  %2644 = vmatpush1.msra.mxu0 %v2382
  %2645 = vmatprep.subr.mxu0 0.0
  %2646 = vmatpush1.msra.mxu0 %v2383
  %2647 = vmatprep.subr.mxu0 0.0
  %2648 = vmatpush1.msra.mxu0 %v2384
  %2649 = vmatprep.subr.mxu0 0.0
  %2650 = vmatpush1.msra.mxu0 %v2385
  %2651 = vmatprep.subr.mxu0 0.0
  %2652 = vmatpush1.msra.mxu0 %v2386
  %2653 = vmatprep.subr.mxu0 0.0
  %2654 = vmatpush1.msra.mxu0 %v2387
  %2655 = vmatprep.subr.mxu0 0.0
  %2656 = vmatpush1.msra.mxu0 %v2388
  %2657 = vmatprep.subr.mxu0 0.0
  %2658 = vmatpush1.msra.mxu0 %v2389
  %2659 = vmatprep.subr.mxu0 0.0
  %2660 = vmatpush1.msra.mxu0 %v2390
  %2661 = vmatprep.subr.mxu0 0.0
  %2662 = vmatpush1.msra.mxu0 %v2391
  %2663 = vmatprep.subr.mxu0 0.0
  %2664 = vmatpush1.msra.mxu0 %v2392
  %2665 = vmatprep.subr.mxu0 0.0
  %2666 = vmatpush1.msra.mxu0 %v2393
  %2667 = vmatprep.subr.mxu0 0.0
  %2668 = vmatpush1.msra.mxu0 %v2394
  %2669 = vmatprep.subr.mxu0 0.0
  %2670 = vmatpush1.msra.mxu0 %v2395
  %2671 = vmatprep.subr.mxu0 0.0
  %2672 = vmatpush1.msra.mxu0 %v2396
  %2673 = vmatprep.subr.mxu0 0.0
  %2674 = vmatpush1.msra.mxu0 %v2397
  %2675 = vmatprep.subr.mxu0 0.0
  %2676 = vmatpush1.msra.mxu0 %v2398
  %2677 = vmatprep.subr.mxu0 0.0
  %2678 = vmatpush1.msra.mxu0 %v2399
  %2679 = vmatprep.subr.mxu0 0.0
  %2680 = vmatpush1.msra.mxu0 %v2400
  %2681 = vmatprep.subr.mxu0 0.0
  %2682 = vmatpush1.msra.mxu0 %v2401
  %2683 = vmatprep.mubr.f32.mxu0 %v1857
  %2684 = vmatmul.mubr.f32.gmra.mrb[0].mxu0 %v1856
  %v2685 = vpop.f32.mrb[0].mxu0
  %v2686 = vadd.f32 %v2616, %v2685
  %v2687 = vpop.f32.mrb[0].mxu0
  %2688 = vdwg.mxu0
  %2689 = vst [vmem:[%s11 + $0x2] sm:$0x3] %v2686
  // Predicated region
  $region46: #{tlib_classifier_mdd_forward.1} parent=0 // pred_check
    _
  $region47: #{tlib_classifier_mdd_forward.1} parent=0 // pred_check_branch
    %2691 = sbr.rel (0) target = $region49
  $region48: #{tlib_classifier_mdd_forward.1} parent=0 // pred_region
    _
  $region49: #{tlib_classifier_mdd_forward.1} parent=0 // pred_fallthru
    _
  // Predicated region
  $region50: #{tlib_classifier_mdd_forward.1} parent=0 // pred_check
    _
  $region51: #{tlib_classifier_mdd_forward.1} parent=0 // pred_check_branch
    %2693 = sbr.rel (0) target = $region53
  $region52: #{tlib_classifier_mdd_forward.1} parent=0 // pred_region
    _
  $region53: #{tlib_classifier_mdd_forward.1} parent=0 // pred_fallthru
    _

</llo_original>
